<compile_context>
chip_gen: v6e
topology: v6e:2x2x1
jax: 0.10.0
libtpu: 0.0.40
codegen_flags: <defaults>
</compile_context>

<pallas_src>
import jax
import jax.numpy as jnp
from jax.experimental import pallas as pl
from jax.experimental.pallas import tpu as pltpu


def _round_up(x, m):
    return (x + m - 1) // m * m


def _vmem_capacity_bytes():
    try:
        return int(pltpu.get_tpu_info().vmem_capacity_bytes)
    except Exception:
        return 64 << 20          # conservative default (v7x per-TC VMEM)


def _pick_c_tile(C, target):
    """Row tile over the channel dim: full extent, or a multiple of 8 dividing C."""
    if C <= target:
        return C
    best = None
    for t in range(8, target + 1, 8):
        if C % t == 0:
            best = t
    return best if best is not None else C


def _pick_bv_tile(bv_out, bvh_pad, budget_bytes):
    """Column tile over the bv output dim.

    Largest multiple of 128 that divides bv_out while keeping the
    double-buffered bf16 w2 slab (2 * bvh_pad * TN * 2 bytes) under
    budget_bytes; falls back to the full extent (single slab)."""
    if bv_out % 128 != 0:
        # TODO(synk): for a large non-lane-aligned bv_dim, pad the output cols
        # instead and fuse the crop downstream; here we keep the full extent.
        return bv_out
    cap = max(128, (budget_bytes // (4 * bvh_pad)) // 128 * 128)
    if bv_out <= cap:
        return bv_out
    best = bv_out
    for t in range(128, cap + 1, 128):
        if bv_out % t == 0:
            best = t
    return best


def _make_kernel(n_ct):
    def kernel(x_ref, w1_ref, b1_ref, w2_ref, b2_ref, o_ref, h_ref):
        # grid = (view i, bv-column slab j, batch b, channel tile c)
        # x_ref:  (1, 1, TC, fv_pad)   f32
        # w1_ref: (1, fv_pad, bvh_pad) bf16   single-buffered, per-view resident
        # b1_ref: (1, 1, bvh_pad)      f32    single-buffered
        # w2_ref: (1, bvh_pad, TN)     bf16   column slab, double-buffered
        # b2_ref: (1, 1, TN)           f32
        # o_ref:  (1, 1, TC, TN)       f32
        # h_ref:  (B*n_ct, TC, bvh_pad) bf16  per-view hidden cache
        j = pl.program_id(1)
        slot = pl.program_id(2) * n_ct + pl.program_id(3)

        # First matmul only on the first column-slab pass of each view; the
        # bf16 hidden activation is cached per (batch, c-tile) row block and
        # reused for every w2 column slab of the current view.
        @pl.when(j == 0)
        def _():
            x = x_ref[0, 0].astype(jnp.bfloat16)                      # (TC, fv_pad)
            h = jnp.dot(x, w1_ref[0], preferred_element_type=jnp.float32)
            h = jnp.maximum(h + b1_ref[0], 0.0)                       # f32
            h_ref[slot] = h.astype(jnp.bfloat16)                      # (TC, bvh_pad)

        y = jnp.dot(h_ref[slot], w2_ref[0],
                    preferred_element_type=jnp.float32)               # (TC, TN)
        y = jnp.maximum(y + b2_ref[0], 0.0)
        o_ref[0, 0] = y.astype(o_ref.dtype)

    return kernel


def prepare_params(params):
    """Pad (zeros, BEFORE the bf16 cast) and cast the per-view MLP weights.

    Call once and cache the result across forward calls -- this replaces the
    previous per-call jnp.pad + astype HBM passes.
      in : (w1 (N,fv,bv), b1 (N,1,bv), w2 (N,bv,bv), b2 (N,1,bv))  f32
      out: (w1 (N,fv_pad,bvh_pad) bf16, b1 (N,1,bvh_pad) f32,
            w2 (N,bvh_pad,bv)     bf16, b2 (N,1,bv)      f32)
    Padded w1 columns / b1 lanes are zero -> padded hidden lanes are exactly
    ReLU(0)=0 -> padded w2 rows contribute nothing: the output is exact."""
    w1, b1, w2, b2 = params
    _, fv_dim, bv_dim = w1.shape
    fv_pad = _round_up(fv_dim, 128)
    bvh_pad = _round_up(bv_dim, 128)
    w1 = jnp.pad(w1, ((0, 0), (0, fv_pad - fv_dim), (0, bvh_pad - bv_dim)))
    b1 = jnp.pad(b1, ((0, 0), (0, 0), (0, bvh_pad - bv_dim)))
    w2 = jnp.pad(w2, ((0, 0), (0, bvh_pad - bv_dim), (0, 0)))
    return (w1.astype(jnp.bfloat16), b1.astype(jnp.float32),
            w2.astype(jnp.bfloat16), b2.astype(jnp.float32))


def view_transformation(feat, params, bv_size, *, c_tile=None):
    """feat: (B, N, C, H, W) f32.  params: output of prepare_params (preferred)
    or raw f32 params (padded/cast per call).  Returns (B, N, C, bvH, bvW)."""
    B, N, C, H, W = feat.shape
    fv_dim = H * W
    w1, b1, w2, b2 = params
    if w1.dtype != jnp.bfloat16:
        # Prefer calling prepare_params once outside and caching the result.
        w1, b1, w2, b2 = prepare_params((w1, b1, w2, b2))

    nv, fv_pad, bvh_pad = w1.shape
    bv_out = w2.shape[2]
    assert nv == N and fv_pad >= fv_dim and w2.shape[1] == bvh_pad
    assert bv_out == bv_size[0] * bv_size[1]

    # Free, contiguous reshape; the (B, N) permutation and per-view weight
    # selection live entirely in the index_maps (no HBM transpose).
    x = feat.reshape(B, N, C, fv_dim)
    if fv_pad != fv_dim:
        # Lane-dense x loads / clean MXU K.  Padded w1 rows are zero, so the
        # extra K contributions vanish.  x is tiny vs the weight streams.
        x = jnp.pad(x, ((0, 0), (0, 0), (0, 0), (0, fv_pad - fv_dim)))

    vmem_cap = _vmem_capacity_bytes()
    tc_target = 512 if vmem_cap >= (100 << 20) else 256     # v5e/v6e vs v7x
    TC = c_tile if c_tile is not None else _pick_c_tile(C, tc_target)
    assert C % TC == 0 and (TC == C or TC % 8 == 0)
    n_ct = C // TC

    TN = _pick_bv_tile(bv_out, bvh_pad, budget_bytes=max(8 << 20, vmem_cap // 8))
    assert bv_out % TN == 0
    n_jt = bv_out // TN

    flops = 2 * B * N * C * (fv_pad * bvh_pad + bvh_pad * bv_out)
    bytes_accessed = (x.size * 4 * n_jt                      # x re-read per col slab
                      + w1.size * 2 + b1.size * 4
                      + w2.size * 2 + b2.size * 4
                      + B * N * C * bv_out * 4)

    need = (2 * TC * fv_pad * 4                              # x (double-buffered)
            + fv_pad * bvh_pad * 2 + bvh_pad * 4             # w1/b1 (single-buffered)
            + 2 * (bvh_pad * TN * 2 + TN * 4)                # w2/b2 slabs (double)
            + 2 * TC * TN * 4                                # out (double)
            + B * n_ct * TC * bvh_pad * 2                    # h cache scratch (bf16)
            + TC * bvh_pad * 4 + TC * TN * 4)                # live f32 intermediates
    hard_cap = int(0.875 * vmem_cap)                         # ~8 MiB Mosaic headroom
    vmem_limit = int(min(hard_cap, max(need * 3 // 2, 24 << 20)))
    vmem_limit = max(vmem_limit, min(need, hard_cap))

    def build(single_buffer_weights):
        def wspec(shape, imap):
            if single_buffer_weights:
                return pl.BlockSpec(shape, imap, pipeline_mode=pl.Buffered(1))
            return pl.BlockSpec(shape, imap)

        return pl.pallas_call(
            _make_kernel(n_ct),
            out_shape=jax.ShapeDtypeStruct((B, N, C, bv_out), feat.dtype),
            grid_spec=pltpu.PrefetchScalarGridSpec(
                num_scalar_prefetch=0,
                # view outermost (megacore split), then bv-column slab, then the
                # row axes: each w2 column slab is streamed from HBM exactly once
                # per view and stays VMEM-resident across all (batch, c-tile) rows.
                grid=(N, n_jt, B, n_ct),
                in_specs=[
                    pl.BlockSpec((1, 1, TC, fv_pad), lambda i, j, b, c: (b, i, c, 0)),
                    wspec((1, fv_pad, bvh_pad), lambda i, j, b, c: (i, 0, 0)),
                    wspec((1, 1, bvh_pad), lambda i, j, b, c: (i, 0, 0)),
                    pl.BlockSpec((1, bvh_pad, TN), lambda i, j, b, c: (i, 0, j)),
                    pl.BlockSpec((1, 1, TN), lambda i, j, b, c: (i, 0, j)),
                ],
                out_specs=pl.BlockSpec((1, 1, TC, TN),
                                       lambda i, j, b, c: (b, i, c, j)),
                scratch_shapes=[pltpu.VMEM((B * n_ct, TC, bvh_pad), jnp.bfloat16)],
            ),
            compiler_params=pltpu.CompilerParams(
                # Only views are 'parallel': a v7x 2-TC split lands on views so
                # each core streams only its own views' weights (1x HBM traffic).
                dimension_semantics=("parallel", "arbitrary", "arbitrary",
                                     "arbitrary"),
                vmem_limit_bytes=vmem_limit,
            ),
            cost_estimate=pl.CostEstimate(
                flops=flops, transcendentals=0, bytes_accessed=bytes_accessed),
        )

    single_buffer = hasattr(pl, "Buffered")
    try:
        out = build(single_buffer)(x, w1, b1, w2, b2)
    except Exception:
        if not single_buffer:
            raise
        # Fallback: default double-buffered weight specs (previously verified).
        out = build(False)(x, w1, b1, w2, b2)

    # Last dim is exactly bv_dim -> free reshape, no slice / extra HBM pass.
    return out.reshape(B, N, C, bv_size[0], bv_size[1])


def init_params(key, n_views, fv_dim, bv_dim, dtype=jnp.float32):
    """Deterministic init mimicking nn.Linear default (U(-1/sqrt(fan_in), +))."""
    ks = jax.random.split(key, 4 * n_views)
    w1, b1, w2, b2 = [], [], [], []
    for i in range(n_views):
        k_w1, k_b1, k_w2, k_b2 = ks[4 * i: 4 * i + 4]
        lim1 = 1.0 / (fv_dim ** 0.5)
        lim2 = 1.0 / (bv_dim ** 0.5)
        # stored as (in_dim, out_dim) == W^T of the PyTorch (out, in) layout
        w1.append(jax.random.uniform(k_w1, (fv_dim, bv_dim), dtype, -lim1, lim1))
        b1.append(jax.random.uniform(k_b1, (1, bv_dim), dtype, -lim1, lim1))
        w2.append(jax.random.uniform(k_w2, (bv_dim, bv_dim), dtype, -lim2, lim2))
        b2.append(jax.random.uniform(k_b2, (1, bv_dim), dtype, -lim2, lim2))
    return (jnp.stack(w1), jnp.stack(b1), jnp.stack(w2), jnp.stack(b2))


def reference(feat, params, bv_size):
    """Pure-JAX f32 reference replicating the PyTorch forward."""
    B, N, C, H, W = feat.shape
    w1, b1, w2, b2 = params
    x = feat.reshape(B, N, C, H * W)
    outs = []
    for i in range(N):
        h = jnp.maximum(x[:, i] @ w1[i] + b1[i], 0.0)
        y = jnp.maximum(h @ w2[i] + b2[i], 0.0)
        outs.append(y.reshape(B, C, bv_size[0], bv_size[1]))
    return jnp.stack(outs, axis=1)


if __name__ == "__main__":
    B, N, C = 2, 6, 4
    fv_size = (4, 8)   # H, W of front-view feature map
    bv_size = (4, 8)   # H, W of bird-view feature map
    fv_dim = fv_size[0] * fv_size[1]
    bv_dim = bv_size[0] * bv_size[1]

    key = jax.random.PRNGKey(0)
    k_feat, k_params = jax.random.split(key)
    feat = jax.random.normal(k_feat, (B, N, C, fv_size[0], fv_size[1]), jnp.float32)
    raw_params = init_params(k_params, N, fv_dim, bv_dim)

    # Hoisted weight prep: pad + bf16-cast once, reuse across forward calls.
    params = prepare_params(raw_params)

    out = view_transformation(feat, params, bv_size)
    out = jax.block_until_ready(out)

    ref = reference(feat, raw_params, bv_size)
    assert out.shape == (B, N, C, bv_size[0], bv_size[1])
    # bf16 MXU inputs with f32 accumulation -> looser tolerance vs f32 ref.
    assert jnp.allclose(out, ref, atol=2e-2, rtol=2e-2), float(
        jnp.max(jnp.abs(out - ref)))
    print("KERNEL_OK")
</pallas_src>

<mosaic_0001>
module attributes {stable_mosaic.version = 11 : i64} {
  func.func @kernel(%arg0: i32, %arg1: i32, %arg2: i32, %arg3: i32, %arg4: memref<1x1x4x128xf32, #tpu.memory_space<vmem>>, %arg5: memref<1x128x128xbf16, #tpu.memory_space<vmem>>, %arg6: memref<1x1x128xf32, #tpu.memory_space<vmem>>, %arg7: memref<1x128x32xbf16, #tpu.memory_space<vmem>>, %arg8: memref<1x1x32xf32, #tpu.memory_space<vmem>>, %arg9: memref<1x1x4x32xf32, #tpu.memory_space<vmem>>, %arg10: memref<2x4x128xbf16, #tpu.memory_space<vmem>>) attributes {dimension_semantics = [#tpu.dimension_semantics<parallel>, #tpu.dimension_semantics<arbitrary>, #tpu.dimension_semantics<arbitrary>, #tpu.dimension_semantics<arbitrary>], iteration_bounds = array<i64: 6, 1, 2, 1>, scalar_prefetch = 0 : i64, scratch_operands = 1 : i64, tpu.core_type = #tpu.core_type<tc>, window_params = [{transform_indices = @transform_0, window_bounds = array<i64: 1, 1, 4, 128>}, {pipeline_mode = #tpu.pipeline_mode<synchronous>, transform_indices = @transform_1, window_bounds = array<i64: 1, 128, 128>}, {pipeline_mode = #tpu.pipeline_mode<synchronous>, transform_indices = @transform_2, window_bounds = array<i64: 1, 1, 128>}, {transform_indices = @transform_3, window_bounds = array<i64: 1, 128, 32>}, {transform_indices = @transform_4, window_bounds = array<i64: 1, 1, 32>}, {transform_indices = @transform_5, window_bounds = array<i64: 1, 1, 4, 32>}]} {
    %c1_i32 = arith.constant 1 : i32
    %0 = arith.muli %arg2, %c1_i32 : i32
    %1 = arith.addi %0, %arg3 : i32
    %c0_i32 = arith.constant 0 : i32
    %2 = arith.cmpi eq, %arg1, %c0_i32 : i32
    %3 = arith.extui %2 : i1 to i32
    %c0_i32_0 = arith.constant 0 : i32
    %4 = arith.cmpi ne, %3, %c0_i32_0 : i32
    scf.if %4 {
      %c0_13 = arith.constant 0 : index
      %c0_14 = arith.constant 0 : index
      %c0_15 = arith.constant 0 : index
      %c0_16 = arith.constant 0 : index
      %20 = vector.load %arg4[%c0_13, %c0_14, %c0_15, %c0_16] : memref<1x1x4x128xf32, #tpu.memory_space<vmem>>, vector<1x1x4x128xf32>
      %21 = vector.shape_cast %20 : vector<1x1x4x128xf32> to vector<4x128xf32>
      %22 = arith.truncf %21 : vector<4x128xf32> to vector<4x128xbf16>
      %c0_17 = arith.constant 0 : index
      %c0_18 = arith.constant 0 : index
      %c0_19 = arith.constant 0 : index
      %23 = vector.load %arg5[%c0_17, %c0_18, %c0_19] : memref<1x128x128xbf16, #tpu.memory_space<vmem>>, vector<1x128x128xbf16>
      %24 = vector.shape_cast %23 : vector<1x128x128xbf16> to vector<128x128xbf16>
      %cst_20 = arith.constant dense<0.000000e+00> : vector<4x128xf32>
      %25 = tpu.matmul %22, %24, %cst_20 {dimension_numbers = #tpu.dot_dimension_numbers<[1], [0], [0], [1], [0, 0, 1, 1], [], []>} : vector<4x128xbf16>, vector<128x128xbf16>, vector<4x128xf32> -> vector<4x128xf32>
      %c0_21 = arith.constant 0 : index
      %c0_22 = arith.constant 0 : index
      %c0_23 = arith.constant 0 : index
      %26 = vector.load %arg6[%c0_21, %c0_22, %c0_23] : memref<1x1x128xf32, #tpu.memory_space<vmem>>, vector<1x1x128xf32>
      %27 = vector.shape_cast %26 : vector<1x1x128xf32> to vector<1x128xf32>
      %28 = vector.broadcast %27 : vector<1x128xf32> to vector<4x128xf32>
      %29 = arith.addf %25, %28 : vector<4x128xf32>
      %cst_24 = arith.constant 0.000000e+00 : f32
      %30 = vector.broadcast %cst_24 : f32 to vector<4x128xf32>
      %31 = arith.maximumf %29, %30 : vector<4x128xf32>
      %32 = arith.truncf %31 : vector<4x128xf32> to vector<4x128xbf16>
      %33 = arith.index_cast %1 : i32 to index
      %c0_25 = arith.constant 0 : index
      %c0_26 = arith.constant 0 : index
      %34 = vector.load %arg10[%33, %c0_25, %c0_26] : memref<2x4x128xbf16, #tpu.memory_space<vmem>>, vector<1x4x128xbf16>
      %35 = vector.shape_cast %34 : vector<1x4x128xbf16> to vector<4x128xbf16>
      %36 = vector.shape_cast %32 : vector<4x128xbf16> to vector<1x4x128xbf16>
      tpu.vector_store %arg10[%33, %c0_25, %c0_26], %36 {strides = array<i32>} : memref<2x4x128xbf16, #tpu.memory_space<vmem>>, vector<1x4x128xbf16>,
    } else {
    }
    %5 = arith.index_cast %1 : i32 to index
    %c0 = arith.constant 0 : index
    %c0_1 = arith.constant 0 : index
    %6 = vector.load %arg10[%5, %c0, %c0_1] : memref<2x4x128xbf16, #tpu.memory_space<vmem>>, vector<1x4x128xbf16>
    %7 = vector.shape_cast %6 : vector<1x4x128xbf16> to vector<4x128xbf16>
    %c0_2 = arith.constant 0 : index
    %c0_3 = arith.constant 0 : index
    %c0_4 = arith.constant 0 : index
    %8 = vector.load %arg7[%c0_2, %c0_3, %c0_4] : memref<1x128x32xbf16, #tpu.memory_space<vmem>>, vector<1x128x32xbf16>
    %9 = vector.shape_cast %8 : vector<1x128x32xbf16> to vector<128x32xbf16>
    %cst = arith.constant dense<0.000000e+00> : vector<4x32xf32>
    %10 = tpu.matmul %7, %9, %cst {dimension_numbers = #tpu.dot_dimension_numbers<[1], [0], [0], [1], [0, 0, 1, 1], [], []>} : vector<4x128xbf16>, vector<128x32xbf16>, vector<4x32xf32> -> vector<4x32xf32>
    %c0_5 = arith.constant 0 : index
    %c0_6 = arith.constant 0 : index
    %c0_7 = arith.constant 0 : index
    %11 = vector.load %arg8[%c0_5, %c0_6, %c0_7] : memref<1x1x32xf32, #tpu.memory_space<vmem>>, vector<1x1x32xf32>
    %12 = vector.shape_cast %11 : vector<1x1x32xf32> to vector<1x32xf32>
    %13 = vector.broadcast %12 : vector<1x32xf32> to vector<4x32xf32>
    %14 = arith.addf %10, %13 : vector<4x32xf32>
    %cst_8 = arith.constant 0.000000e+00 : f32
    %15 = vector.broadcast %cst_8 : f32 to vector<4x32xf32>
    %16 = arith.maximumf %14, %15 : vector<4x32xf32>
    %c0_9 = arith.constant 0 : index
    %c0_10 = arith.constant 0 : index
    %c0_11 = arith.constant 0 : index
    %c0_12 = arith.constant 0 : index
    %17 = vector.load %arg9[%c0_9, %c0_10, %c0_11, %c0_12] : memref<1x1x4x32xf32, #tpu.memory_space<vmem>>, vector<1x1x4x32xf32>
    %18 = vector.shape_cast %17 : vector<1x1x4x32xf32> to vector<4x32xf32>
    %19 = vector.shape_cast %16 : vector<4x32xf32> to vector<1x1x4x32xf32>
    tpu.vector_store %arg9[%c0_9, %c0_10, %c0_11, %c0_12], %19 {strides = array<i32>} : memref<1x1x4x32xf32, #tpu.memory_space<vmem>>, vector<1x1x4x32xf32>,
    return
  }
  func.func @transform_0(%arg0: i32, %arg1: i32, %arg2: i32, %arg3: i32) -> (i32, i32, i32, i32) {
    %c0_i32 = arith.constant 0 : i32
    %c0_i32_0 = arith.constant 0 : i32
    return %arg2, %arg0, %arg3, %c0_i32 : i32, i32, i32, i32
  }
  func.func @transform_1(%arg0: i32, %arg1: i32, %arg2: i32, %arg3: i32) -> (i32, i32, i32) {
    %c0_i32 = arith.constant 0 : i32
    %c0_i32_0 = arith.constant 0 : i32
    %c0_i32_1 = arith.constant 0 : i32
    return %arg0, %c0_i32, %c0_i32_0 : i32, i32, i32
  }
  func.func @transform_2(%arg0: i32, %arg1: i32, %arg2: i32, %arg3: i32) -> (i32, i32, i32) {
    %c0_i32 = arith.constant 0 : i32
    %c0_i32_0 = arith.constant 0 : i32
    %c0_i32_1 = arith.constant 0 : i32
    return %arg0, %c0_i32, %c0_i32_0 : i32, i32, i32
  }
  func.func @transform_3(%arg0: i32, %arg1: i32, %arg2: i32, %arg3: i32) -> (i32, i32, i32) {
    %c0_i32 = arith.constant 0 : i32
    %c0_i32_0 = arith.constant 0 : i32
    return %arg0, %c0_i32, %arg1 : i32, i32, i32
  }
  func.func @transform_4(%arg0: i32, %arg1: i32, %arg2: i32, %arg3: i32) -> (i32, i32, i32) {
    %c0_i32 = arith.constant 0 : i32
    %c0_i32_0 = arith.constant 0 : i32
    return %arg0, %c0_i32, %arg1 : i32, i32, i32
  }
  func.func @transform_5(%arg0: i32, %arg1: i32, %arg2: i32, %arg3: i32) -> (i32, i32, i32, i32) {
    %c0_i32 = arith.constant 0 : i32
    return %arg2, %arg0, %arg3, %arg1 : i32, i32, i32, i32
  }
}

module attributes {stable_mosaic.version = 11 : i64} {
  func.func @kernel(%arg0: i32, %arg1: i32, %arg2: i32, %arg3: i32, %arg4: memref<1x1x4x128xf32, #tpu.memory_space<vmem>>, %arg5: memref<1x128x128xbf16, #tpu.memory_space<vmem>>, %arg6: memref<1x1x128xf32, #tpu.memory_space<vmem>>, %arg7: memref<1x128x32xbf16, #tpu.memory_space<vmem>>, %arg8: memref<1x1x32xf32, #tpu.memory_space<vmem>>, %arg9: memref<1x1x4x32xf32, #tpu.memory_space<vmem>>, %arg10: memref<2x4x128xbf16, #tpu.memory_space<vmem>>) attributes {dimension_semantics = [#tpu.dimension_semantics<parallel>, #tpu.dimension_semantics<arbitrary>, #tpu.dimension_semantics<arbitrary>, #tpu.dimension_semantics<arbitrary>], iteration_bounds = array<i64: 6, 1, 2, 1>, scalar_prefetch = 0 : i64, scratch_operands = 1 : i64, tpu.core_type = #tpu.core_type<tc>, window_params = [{transform_indices = @transform_0, window_bounds = array<i64: 1, 1, 4, 128>}, {transform_indices = @transform_1, window_bounds = array<i64: 1, 128, 128>}, {transform_indices = @transform_2, window_bounds = array<i64: 1, 1, 128>}, {transform_indices = @transform_3, window_bounds = array<i64: 1, 128, 32>}, {transform_indices = @transform_4, window_bounds = array<i64: 1, 1, 32>}, {transform_indices = @transform_5, window_bounds = array<i64: 1, 1, 4, 32>}]} {
    %c1_i32 = arith.constant 1 : i32
    %0 = arith.muli %arg2, %c1_i32 : i32
    %1 = arith.addi %0, %arg3 : i32
    %c0_i32 = arith.constant 0 : i32
    %2 = arith.cmpi eq, %arg1, %c0_i32 : i32
    %3 = arith.extui %2 : i1 to i32
    %c0_i32_0 = arith.constant 0 : i32
    %4 = arith.cmpi ne, %3, %c0_i32_0 : i32
    scf.if %4 {
      %c0_13 = arith.constant 0 : index
      %c0_14 = arith.constant 0 : index
      %c0_15 = arith.constant 0 : index
      %c0_16 = arith.constant 0 : index
      %20 = vector.load %arg4[%c0_13, %c0_14, %c0_15, %c0_16] : memref<1x1x4x128xf32, #tpu.memory_space<vmem>>, vector<1x1x4x128xf32>
      %21 = vector.shape_cast %20 : vector<1x1x4x128xf32> to vector<4x128xf32>
      %22 = arith.truncf %21 : vector<4x128xf32> to vector<4x128xbf16>
      %c0_17 = arith.constant 0 : index
      %c0_18 = arith.constant 0 : index
      %c0_19 = arith.constant 0 : index
      %23 = vector.load %arg5[%c0_17, %c0_18, %c0_19] : memref<1x128x128xbf16, #tpu.memory_space<vmem>>, vector<1x128x128xbf16>
      %24 = vector.shape_cast %23 : vector<1x128x128xbf16> to vector<128x128xbf16>
      %cst_20 = arith.constant dense<0.000000e+00> : vector<4x128xf32>
      %25 = tpu.matmul %22, %24, %cst_20 {dimension_numbers = #tpu.dot_dimension_numbers<[1], [0], [0], [1], [0, 0, 1, 1], [], []>} : vector<4x128xbf16>, vector<128x128xbf16>, vector<4x128xf32> -> vector<4x128xf32>
      %c0_21 = arith.constant 0 : index
      %c0_22 = arith.constant 0 : index
      %c0_23 = arith.constant 0 : index
      %26 = vector.load %arg6[%c0_21, %c0_22, %c0_23] : memref<1x1x128xf32, #tpu.memory_space<vmem>>, vector<1x1x128xf32>
      %27 = vector.shape_cast %26 : vector<1x1x128xf32> to vector<1x128xf32>
      %28 = vector.broadcast %27 : vector<1x128xf32> to vector<4x128xf32>
      %29 = arith.addf %25, %28 : vector<4x128xf32>
      %cst_24 = arith.constant 0.000000e+00 : f32
      %30 = vector.broadcast %cst_24 : f32 to vector<4x128xf32>
      %31 = arith.maximumf %29, %30 : vector<4x128xf32>
      %32 = arith.truncf %31 : vector<4x128xf32> to vector<4x128xbf16>
      %33 = arith.index_cast %1 : i32 to index
      %c0_25 = arith.constant 0 : index
      %c0_26 = arith.constant 0 : index
      %34 = vector.load %arg10[%33, %c0_25, %c0_26] : memref<2x4x128xbf16, #tpu.memory_space<vmem>>, vector<1x4x128xbf16>
      %35 = vector.shape_cast %34 : vector<1x4x128xbf16> to vector<4x128xbf16>
      %36 = vector.shape_cast %32 : vector<4x128xbf16> to vector<1x4x128xbf16>
      tpu.vector_store %arg10[%33, %c0_25, %c0_26], %36 {strides = array<i32>} : memref<2x4x128xbf16, #tpu.memory_space<vmem>>, vector<1x4x128xbf16>,
    } else {
    }
    %5 = arith.index_cast %1 : i32 to index
    %c0 = arith.constant 0 : index
    %c0_1 = arith.constant 0 : index
    %6 = vector.load %arg10[%5, %c0, %c0_1] : memref<2x4x128xbf16, #tpu.memory_space<vmem>>, vector<1x4x128xbf16>
    %7 = vector.shape_cast %6 : vector<1x4x128xbf16> to vector<4x128xbf16>
    %c0_2 = arith.constant 0 : index
    %c0_3 = arith.constant 0 : index
    %c0_4 = arith.constant 0 : index
    %8 = vector.load %arg7[%c0_2, %c0_3, %c0_4] : memref<1x128x32xbf16, #tpu.memory_space<vmem>>, vector<1x128x32xbf16>
    %9 = vector.shape_cast %8 : vector<1x128x32xbf16> to vector<128x32xbf16>
    %cst = arith.constant dense<0.000000e+00> : vector<4x32xf32>
    %10 = tpu.matmul %7, %9, %cst {dimension_numbers = #tpu.dot_dimension_numbers<[1], [0], [0], [1], [0, 0, 1, 1], [], []>} : vector<4x128xbf16>, vector<128x32xbf16>, vector<4x32xf32> -> vector<4x32xf32>
    %c0_5 = arith.constant 0 : index
    %c0_6 = arith.constant 0 : index
    %c0_7 = arith.constant 0 : index
    %11 = vector.load %arg8[%c0_5, %c0_6, %c0_7] : memref<1x1x32xf32, #tpu.memory_space<vmem>>, vector<1x1x32xf32>
    %12 = vector.shape_cast %11 : vector<1x1x32xf32> to vector<1x32xf32>
    %13 = vector.broadcast %12 : vector<1x32xf32> to vector<4x32xf32>
    %14 = arith.addf %10, %13 : vector<4x32xf32>
    %cst_8 = arith.constant 0.000000e+00 : f32
    %15 = vector.broadcast %cst_8 : f32 to vector<4x32xf32>
    %16 = arith.maximumf %14, %15 : vector<4x32xf32>
    %c0_9 = arith.constant 0 : index
    %c0_10 = arith.constant 0 : index
    %c0_11 = arith.constant 0 : index
    %c0_12 = arith.constant 0 : index
    %17 = vector.load %arg9[%c0_9, %c0_10, %c0_11, %c0_12] : memref<1x1x4x32xf32, #tpu.memory_space<vmem>>, vector<1x1x4x32xf32>
    %18 = vector.shape_cast %17 : vector<1x1x4x32xf32> to vector<4x32xf32>
    %19 = vector.shape_cast %16 : vector<4x32xf32> to vector<1x1x4x32xf32>
    tpu.vector_store %arg9[%c0_9, %c0_10, %c0_11, %c0_12], %19 {strides = array<i32>} : memref<1x1x4x32xf32, #tpu.memory_space<vmem>>, vector<1x1x4x32xf32>,
    return
  }
  func.func @transform_0(%arg0: i32, %arg1: i32, %arg2: i32, %arg3: i32) -> (i32, i32, i32, i32) {
    %c0_i32 = arith.constant 0 : i32
    %c0_i32_0 = arith.constant 0 : i32
    return %arg2, %arg0, %arg3, %c0_i32 : i32, i32, i32, i32
  }
  func.func @transform_1(%arg0: i32, %arg1: i32, %arg2: i32, %arg3: i32) -> (i32, i32, i32) {
    %c0_i32 = arith.constant 0 : i32
    %c0_i32_0 = arith.constant 0 : i32
    %c0_i32_1 = arith.constant 0 : i32
    return %arg0, %c0_i32, %c0_i32_0 : i32, i32, i32
  }
  func.func @transform_2(%arg0: i32, %arg1: i32, %arg2: i32, %arg3: i32) -> (i32, i32, i32) {
    %c0_i32 = arith.constant 0 : i32
    %c0_i32_0 = arith.constant 0 : i32
    %c0_i32_1 = arith.constant 0 : i32
    return %arg0, %c0_i32, %c0_i32_0 : i32, i32, i32
  }
  func.func @transform_3(%arg0: i32, %arg1: i32, %arg2: i32, %arg3: i32) -> (i32, i32, i32) {
    %c0_i32 = arith.constant 0 : i32
    %c0_i32_0 = arith.constant 0 : i32
    return %arg0, %c0_i32, %arg1 : i32, i32, i32
  }
  func.func @transform_4(%arg0: i32, %arg1: i32, %arg2: i32, %arg3: i32) -> (i32, i32, i32) {
    %c0_i32 = arith.constant 0 : i32
    %c0_i32_0 = arith.constant 0 : i32
    return %arg0, %c0_i32, %arg1 : i32, i32, i32
  }
  func.func @transform_5(%arg0: i32, %arg1: i32, %arg2: i32, %arg3: i32) -> (i32, i32, i32, i32) {
    %c0_i32 = arith.constant 0 : i32
    return %arg2, %arg0, %arg3, %arg1 : i32, i32, i32, i32
  }
}

</mosaic_0001>

<llo_original>
// kernel: tpu_custom_call.1
$region0: #{tpu_custom_call.1}
  #allocation0 [shape = 'u32[]', space=smem, size = 0x4, offset = 0x4, fixed_abs, tag = 'smem constant byte address 0x4 - core index']
  #allocation1 [shape = 'u32[144,128]{1,0:T(1,128)}', space=vmem, size = 0x12000, scoped, tag = 'internal scratch']
  #allocation2 [shape = 'bf16[2,4,128]{2,1,0:T(4,128)(2,1)}', space=vmem, size = 0x800, scoped, tag = 'scratch operand']
  %s0 = inlined_call_operand.vmem [shape: f32[2,6,4,128], index: 0, kind: input, shape index: {}]
  %s1 = inlined_call_operand.vmem [shape: bf16[6,128,128], index: 1, kind: input, shape index: {}]
  %s2 = inlined_call_operand.vmem [shape: f32[6,1,128], index: 2, kind: input, shape index: {}]
  %s3 = inlined_call_operand.vmem [shape: bf16[6,128,32], index: 3, kind: input, shape index: {}]
  %s4 = inlined_call_operand.vmem [shape: f32[6,1,32], index: 4, kind: input, shape index: {}]
  %s5 = inlined_call_operand.hbm [shape: f32[2,6,4,32], index: 5, kind: output, shape index: {}]
  %s6 = sld [smem:[#allocation0]]
  $region57: #{tpu_custom_call.1} parent=0
    _
  %s8 = ssub.s32 1, %s6
  %s9 = scalar_select 0, %s8, %s6
  $region1: #{tpu_custom_call.1} parent=0
    #allocation3 [shape = 'u8[4096]{0}', space=vmem, size = 0x1000, scoped, tag = 'output window, operand 0']
    #allocation4 [shape = 's32[2]{0}', space=sflag, size = 0x8, scoped, tag = 'scoped memory for tpu_custom_call.1']
    %10 = vsyncpa [#allocation4], 0
    %s11 = scalar_lea.sflag [#allocation4], 1
    %12 = vsyncpa %s11, 0
    loop: start=0, step=1, limit=14
    $region2: #{tpu_custom_call.1} parent=1 // loop_pre_header
      _
    $region3: #{tpu_custom_call.1} parent=1 // loop_header
      %s14 = sphi 0, %s18
      %p15 = scmp.ge.s32.totalorder %s14, 14
      %s21 = sphi 0, %s47
      %s22 = sphi 0, %s43
      %s23 = sphi 0, %s39
      %s24 = sphi 0, %s35
      %s25 = sphi 0, %s21
      %s26 = sphi 0, %s22
      %s27 = sphi 0, %s23
      %s28 = sphi 0, %s24
      %s29 = sphi 0, %s25
      %s30 = sphi 0, %s26
      %s31 = sphi 0, %s27
      %s32 = sphi 0, %s28
      %s54 = sphi 0, %s56
      %s57 = sphi 0, %s54
      %s58 = sphi 0, %s57
      %s74 = sphi 0, %s58
      %s80 = sphi 0, %s82
      %s83 = sphi 0, %s80
      %s84 = sphi 0, %s83
      %s100 = sphi 0, %s84
      %s106 = sphi 0, %s108
      %s109 = sphi 0, %s106
      %s110 = sphi 0, %s109
      %s126 = sphi 0, %s110
      %s134 = sphi 0, %s136
      %s137 = sphi 0, %s134
      %s138 = sphi 0, %s137
      %s154 = sphi 0, %s138
      %s162 = sphi 0, %s164
      %s165 = sphi 0, %s162
      %s166 = sphi 0, %s165
      %s182 = sphi 0, %s166
      %s194 = sphi 0, %s196
      %s197 = sphi 0, %s194
      %s198 = sphi 0, %s197
      %s214 = sphi 0, %s198
    $region4: #{tpu_custom_call.1} parent=1 // loop_header_branch
      %17 = sbr.rel (%p15) target = $region8
    $region5: #{tpu_custom_call.1} parent=1 // loop_body
      %s19 = ssub.s32 %s14, 1
      %s20 = ssub.s32 %s14, 2
      %s33 = sadd.s32 1, %s24
      %p34 = scmp.ge.s32.totalorder %s33, 1
      %s35 = scalar_select %p34, 0, %s33
      %s36 = sadd.s32 1, %s23
      %s37 = scalar_select %p34, %s36, %s23
      %p38 = scmp.ge.s32.totalorder %s37, 2
      %s39 = scalar_select %p38, 0, %s37
      %s40 = sadd.s32 1, %s22
      %s41 = scalar_select %p38, %s40, %s22
      %p42 = scmp.ge.s32.totalorder %s41, 1
      %s43 = scalar_select %p42, 0, %s41
      %s44 = sadd.s32 1, %s21
      %s45 = scalar_select %p42, %s44, %s21
      %p46 = scmp.ge.s32.totalorder %s45, 6
      %s47 = scalar_select %p46, 0, %s45
      %s48 = ssub.s32 %s23, %s39
      %s49 = ssub.s32 %s21, %s47
      %s50 = sor.u32 %s48, %s49
      %s51 = ssub.s32 %s24, %s35
      %s52 = sor.u32 %s50, %s51
      %p53 = scmp.eq.s32.totalorder %s52, 0
      %s55 = sadd.s32 %s54, 1
      %s56 = scalar_select %p53, %s54, %s55
      %p59 = pneg %p53
      %p60 = scmp.eq.s32.totalorder %s14, 11
      %p61 = por %p59, %p60
      %p62 = scmp.ne.s32.totalorder %s54, %s57
      %p63 = scmp.eq.s32.totalorder %s14, 0
      %p64 = por %p62, %p63
      %p65 = scmp.ne.s32.totalorder %s54, %s57
      %p66 = scmp.eq.s32.totalorder %s19, 11
      %p67 = por %p65, %p66
      %p68 = scmp.ne.s32.totalorder %s57, %s58
      %p69 = scmp.eq.s32.totalorder %s19, 0
      %p70 = por %p68, %p69
      %p71 = scmp.ne.s32.totalorder %s57, %s58
      %p72 = scmp.eq.s32.totalorder %s20, 11
      %p73 = por %p71, %p72
      %p75 = scmp.ne.s32.totalorder %s58, %s74
      %p76 = scmp.eq.s32.totalorder %s20, 0
      %p77 = por %p75, %p76
      %s78 = ssub.s32 %s21, %s47
      %p79 = scmp.eq.s32.totalorder %s78, 0
      %s81 = sadd.s32 %s80, 1
      %s82 = scalar_select %p79, %s80, %s81
      %p85 = pneg %p79
      %p86 = scmp.eq.s32.totalorder %s14, 11
      %p87 = por %p85, %p86
      %p88 = scmp.ne.s32.totalorder %s80, %s83
      %p89 = scmp.eq.s32.totalorder %s14, 0
      %p90 = por %p88, %p89
      %p91 = scmp.ne.s32.totalorder %s80, %s83
      %p92 = scmp.eq.s32.totalorder %s19, 11
      %p93 = por %p91, %p92
      %p94 = scmp.ne.s32.totalorder %s83, %s84
      %p95 = scmp.eq.s32.totalorder %s19, 0
      %p96 = por %p94, %p95
      %p97 = scmp.ne.s32.totalorder %s83, %s84
      %p98 = scmp.eq.s32.totalorder %s20, 11
      %p99 = por %p97, %p98
      %p101 = scmp.ne.s32.totalorder %s84, %s100
      %p102 = scmp.eq.s32.totalorder %s20, 0
      %p103 = por %p101, %p102
      %s104 = ssub.s32 %s21, %s47
      %p105 = scmp.eq.s32.totalorder %s104, 0
      %s107 = sadd.s32 %s106, 1
      %s108 = scalar_select %p105, %s106, %s107
      %p111 = pneg %p105
      %p112 = scmp.eq.s32.totalorder %s14, 11
      %p113 = por %p111, %p112
      %p114 = scmp.ne.s32.totalorder %s106, %s109
      %p115 = scmp.eq.s32.totalorder %s14, 0
      %p116 = por %p114, %p115
      %p117 = scmp.ne.s32.totalorder %s106, %s109
      %p118 = scmp.eq.s32.totalorder %s19, 11
      %p119 = por %p117, %p118
      %p120 = scmp.ne.s32.totalorder %s109, %s110
      %p121 = scmp.eq.s32.totalorder %s19, 0
      %p122 = por %p120, %p121
      %p123 = scmp.ne.s32.totalorder %s109, %s110
      %p124 = scmp.eq.s32.totalorder %s20, 11
      %p125 = por %p123, %p124
      %p127 = scmp.ne.s32.totalorder %s110, %s126
      %p128 = scmp.eq.s32.totalorder %s20, 0
      %p129 = por %p127, %p128
      %s130 = ssub.s32 %s21, %s47
      %s131 = ssub.s32 %s22, %s43
      %s132 = sor.u32 %s130, %s131
      %p133 = scmp.eq.s32.totalorder %s132, 0
      %s135 = sadd.s32 %s134, 1
      %s136 = scalar_select %p133, %s134, %s135
      %p139 = pneg %p133
      %p140 = scmp.eq.s32.totalorder %s14, 11
      %p141 = por %p139, %p140
      %p142 = scmp.ne.s32.totalorder %s134, %s137
      %p143 = scmp.eq.s32.totalorder %s14, 0
      %p144 = por %p142, %p143
      %p145 = scmp.ne.s32.totalorder %s134, %s137
      %p146 = scmp.eq.s32.totalorder %s19, 11
      %p147 = por %p145, %p146
      %p148 = scmp.ne.s32.totalorder %s137, %s138
      %p149 = scmp.eq.s32.totalorder %s19, 0
      %p150 = por %p148, %p149
      %p151 = scmp.ne.s32.totalorder %s137, %s138
      %p152 = scmp.eq.s32.totalorder %s20, 11
      %p153 = por %p151, %p152
      %p155 = scmp.ne.s32.totalorder %s138, %s154
      %p156 = scmp.eq.s32.totalorder %s20, 0
      %p157 = por %p155, %p156
      %s158 = ssub.s32 %s21, %s47
      %s159 = ssub.s32 %s22, %s43
      %s160 = sor.u32 %s158, %s159
      %p161 = scmp.eq.s32.totalorder %s160, 0
      %s163 = sadd.s32 %s162, 1
      %s164 = scalar_select %p161, %s162, %s163
      %p167 = pneg %p161
      %p168 = scmp.eq.s32.totalorder %s14, 11
      %p169 = por %p167, %p168
      %p170 = scmp.ne.s32.totalorder %s162, %s165
      %p171 = scmp.eq.s32.totalorder %s14, 0
      %p172 = por %p170, %p171
      %p173 = scmp.ne.s32.totalorder %s162, %s165
      %p174 = scmp.eq.s32.totalorder %s19, 11
      %p175 = por %p173, %p174
      %p176 = scmp.ne.s32.totalorder %s165, %s166
      %p177 = scmp.eq.s32.totalorder %s19, 0
      %p178 = por %p176, %p177
      %p179 = scmp.ne.s32.totalorder %s165, %s166
      %p180 = scmp.eq.s32.totalorder %s20, 11
      %p181 = por %p179, %p180
      %p183 = scmp.ne.s32.totalorder %s166, %s182
      %p184 = scmp.eq.s32.totalorder %s20, 0
      %p185 = por %p183, %p184
      %s186 = ssub.s32 %s23, %s39
      %s187 = ssub.s32 %s21, %s47
      %s188 = sor.u32 %s186, %s187
      %s189 = ssub.s32 %s24, %s35
      %s190 = sor.u32 %s188, %s189
      %s191 = ssub.s32 %s22, %s43
      %s192 = sor.u32 %s190, %s191
      %p193 = scmp.eq.s32.totalorder %s192, 0
      %s195 = sadd.s32 %s194, 1
      %s196 = scalar_select %p193, %s194, %s195
      %p199 = pneg %p193
      %p200 = scmp.eq.s32.totalorder %s14, 11
      %p201 = por %p199, %p200
      %p202 = scmp.ne.s32.totalorder %s194, %s197
      %p203 = scmp.eq.s32.totalorder %s14, 0
      %p204 = por %p202, %p203
      %p205 = scmp.ne.s32.totalorder %s194, %s197
      %p206 = scmp.eq.s32.totalorder %s19, 11
      %p207 = por %p205, %p206
      %p208 = scmp.ne.s32.totalorder %s197, %s198
      %p209 = scmp.eq.s32.totalorder %s19, 0
      %p210 = por %p208, %p209
      %p211 = scmp.ne.s32.totalorder %s197, %s198
      %p212 = scmp.eq.s32.totalorder %s20, 11
      %p213 = por %p211, %p212
      %p215 = scmp.ne.s32.totalorder %s198, %s214
      %p216 = scmp.eq.s32.totalorder %s20, 0
      %p217 = por %p215, %p216
      %p218 = scmp.le.s32.totalorder 1, %s14
      %p219 = scmp.lt.s32.totalorder %s14, 13
      %p220 = pnand %p218, %p219
      %p221 = pneg %p220
      // Predicated region
      $region9: #{tpu_custom_call.1} parent=5 // pred_check
        _
      $region10: #{tpu_custom_call.1} parent=5 // pred_check_branch
        %223 = sbr.rel (%p220) target = $region12
      $region11: #{tpu_custom_call.1} parent=5 // pred_region
        %s224 = ssub.s32 %s14, 1
        // Predicated region
        $region13: #{tpu_custom_call.1} parent=11 // pred_check
          %p225 = pneg %p96
        $region14: #{tpu_custom_call.1} parent=11 // pred_check_branch
          %227 = sbr.rel (%p225) target = $region16
        $region15: #{tpu_custom_call.1} parent=11 // pred_region
          %p228 = scmp.lt.s32.totalorder %s25, 5
          %s229 = scalar_select %p228, %s25, 5
          %s230 = smul.addr %s229, 16
          %s231 = smul.addr %s230, 4
          %s232 = scalar_lea.vmem %s1, %s231
        $region16: #{tpu_custom_call.1} parent=11 // pred_fallthru
          _
        // Predicated region
        $region17: #{tpu_custom_call.1} parent=11 // pred_check
          %p233 = pneg %p122
        $region18: #{tpu_custom_call.1} parent=11 // pred_check_branch
          %235 = sbr.rel (%p233) target = $region20
        $region19: #{tpu_custom_call.1} parent=11 // pred_region
          %p236 = scmp.lt.s32.totalorder %s25, 5
          %s237 = scalar_select %p236, %s25, 5
          %s238 = scalar_lea.vmem %s2, %s237
        $region20: #{tpu_custom_call.1} parent=11 // pred_fallthru
          _
      $region12: #{tpu_custom_call.1} parent=5 // pred_fallthru
        _
      %p239 = scmp.lt.s32.totalorder %s14, 12
      // Predicated region
      $region21: #{tpu_custom_call.1} parent=5 // pred_check
        %p240 = pneg %p239
      $region22: #{tpu_custom_call.1} parent=5 // pred_check_branch
        %242 = sbr.rel (%p240) target = $region24
      $region23: #{tpu_custom_call.1} parent=5 // pred_region
        // Predicated region
        $region25: #{tpu_custom_call.1} parent=23 // pred_check
          %p243 = pneg %p64
        $region26: #{tpu_custom_call.1} parent=23 // pred_check_branch
          %245 = sbr.rel (%p243) target = $region28
        $region27: #{tpu_custom_call.1} parent=23 // pred_region
          %p246 = scmp.lt.s32.totalorder %s23, 1
          %s247 = scalar_select %p246, %s23, 1
          %p248 = scmp.lt.s32.totalorder %s21, 5
          %s249 = scalar_select %p248, %s21, 5
          %p250 = scmp.lt.s32.totalorder %s24, 0
          %s251 = scalar_select %p250, %s24, 0
          %s252 = sadd.s32 %s251, %s249
          %s253 = smul.addr %s247, 6
          %s254 = sadd.s32 %s252, %s253
          %s255 = smul.addr %s254, 4
          %s256 = scalar_lea.vmem %s0, %s255
        $region28: #{tpu_custom_call.1} parent=23 // pred_fallthru
          _
        // Predicated region
        $region29: #{tpu_custom_call.1} parent=23 // pred_check
          %p257 = pneg %p144
        $region30: #{tpu_custom_call.1} parent=23 // pred_check_branch
          %259 = sbr.rel (%p257) target = $region32
        $region31: #{tpu_custom_call.1} parent=23 // pred_region
          %p260 = scmp.lt.s32.totalorder %s21, 5
          %s261 = scalar_select %p260, %s21, 5
          %p262 = scmp.lt.s32.totalorder %s22, 0
          %s263 = scalar_select %p262, %s22, 0
          %s264 = smul.addr %s261, 16
          %s265 = sadd.s32 %s263, %s264
          %s266 = smul.addr %s265, 4
          %s267 = scalar_lea.vmem %s3, %s266
        $region32: #{tpu_custom_call.1} parent=23 // pred_fallthru
          _
        // Predicated region
        $region33: #{tpu_custom_call.1} parent=23 // pred_check
          %p268 = pneg %p172
        $region34: #{tpu_custom_call.1} parent=23 // pred_check_branch
          %270 = sbr.rel (%p268) target = $region36
        $region35: #{tpu_custom_call.1} parent=23 // pred_region
          %p271 = scmp.lt.s32.totalorder %s21, 5
          %s272 = scalar_select %p271, %s21, 5
          %p273 = scmp.lt.s32.totalorder %s22, 0
          %s274 = scalar_select %p273, %s22, 0
          %s275 = sadd.s32 %s274, %s272
          %s276 = scalar_lea.vmem %s4, %s275
        $region36: #{tpu_custom_call.1} parent=23 // pred_fallthru
          _
      $region24: #{tpu_custom_call.1} parent=5 // pred_fallthru
        _
      %p277 = scmp.le.s32.totalorder 1, %s14
      %p278 = scmp.lt.s32.totalorder %s14, 13
      %p279 = pnand %p277, %p278
      %p280 = pneg %p279
      // Predicated region
      $region37: #{tpu_custom_call.1} parent=5 // pred_check
        _
      $region38: #{tpu_custom_call.1} parent=5 // pred_check_branch
        %282 = sbr.rel (%p279) target = $region40
      $region39: #{tpu_custom_call.1} parent=5 // pred_region
        %s283 = ssub.s32 %s14, 1
        %p284 = scmp.lt.s32.totalorder %s27, 1
        %s285 = scalar_select %p284, %s27, 1
        %p286 = scmp.lt.s32.totalorder %s25, 5
        %s287 = scalar_select %p286, %s25, 5
        %p288 = scmp.lt.s32.totalorder %s28, 0
        %s289 = scalar_select %p288, %s28, 0
        %s290 = sadd.s32 %s289, %s287
        %s291 = smul.addr %s285, 6
        %s292 = sadd.s32 %s290, %s291
        %s293 = smul.addr %s292, 4
        %s294 = scalar_lea.vmem %s0, %s293
        %p295 = pneg %p70
        %p296 = pneg %p67
        %p297 = scmp.lt.s32.totalorder %s25, 5
        %s298 = scalar_select %p297, %s25, 5
        %s299 = smul.addr %s298, 16
        %s300 = smul.addr %s299, 4
        %s301 = scalar_lea.vmem %s1, %s300
        %p302 = pneg %p96
        %p303 = pneg %p93
        %p304 = scmp.lt.s32.totalorder %s25, 5
        %s305 = scalar_select %p304, %s25, 5
        %s306 = scalar_lea.vmem %s2, %s305
        %p307 = pneg %p122
        %p308 = pneg %p119
        %p309 = scmp.lt.s32.totalorder %s25, 5
        %s310 = scalar_select %p309, %s25, 5
        %p311 = scmp.lt.s32.totalorder %s26, 0
        %s312 = scalar_select %p311, %s26, 0
        %s313 = smul.addr %s310, 16
        %s314 = sadd.s32 %s312, %s313
        %s315 = smul.addr %s314, 4
        %s316 = scalar_lea.vmem %s3, %s315
        %p317 = pneg %p150
        %p318 = pneg %p147
        %p319 = scmp.lt.s32.totalorder %s25, 5
        %s320 = scalar_select %p319, %s25, 5
        %p321 = scmp.lt.s32.totalorder %s26, 0
        %s322 = scalar_select %p321, %s26, 0
        %s323 = sadd.s32 %s322, %s320
        %s324 = scalar_lea.vmem %s4, %s323
        %p325 = pneg %p178
        %p326 = pneg %p175
        %p327 = pneg %p210
        %p328 = pneg %p207
        %s329 = sand.u32 %s197, 1
        %s330 = scalar_lea.sflag [#allocation4], %s329
        %s331 = sand.u32 %s197, 1
        %s332 = smul.addr %s331, 4
        %s333 = scalar_lea.vmem [#allocation3], %s332
        %p334 = scmp.lt.s32.totalorder %s27, 1
        %s335 = scalar_select %p334, %s27, 1
        %p336 = scmp.lt.s32.totalorder %s25, 5
        %s337 = scalar_select %p336, %s25, 5
        %p338 = scmp.lt.s32.totalorder %s28, 0
        %s339 = scalar_select %p338, %s28, 0
        %s340 = sadd.s32 %s339, %s337
        %s341 = smul.addr %s335, 6
        %s342 = sadd.s32 %s340, %s341
        %s343 = smul.addr %s342, 4
        %s344 = scalar_lea.vmem %s0, %s343
        %p345 = scmp.lt.s32.totalorder %s25, 5
        %s346 = scalar_select %p345, %s25, 5
        %s347 = smul.addr %s346, 16
        %s348 = smul.addr %s347, 4
        %s349 = scalar_lea.vmem %s1, %s348
        %p350 = scmp.lt.s32.totalorder %s25, 5
        %s351 = scalar_select %p350, %s25, 5
        %s352 = scalar_lea.vmem %s2, %s351
        %p353 = scmp.lt.s32.totalorder %s25, 5
        %s354 = scalar_select %p353, %s25, 5
        %p355 = scmp.lt.s32.totalorder %s26, 0
        %s356 = scalar_select %p355, %s26, 0
        %s357 = smul.addr %s354, 16
        %s358 = sadd.s32 %s356, %s357
        %s359 = smul.addr %s358, 4
        %s360 = scalar_lea.vmem %s3, %s359
        %p361 = scmp.lt.s32.totalorder %s25, 5
        %s362 = scalar_select %p361, %s25, 5
        %p363 = scmp.lt.s32.totalorder %s26, 0
        %s364 = scalar_select %p363, %s26, 0
        %s365 = sadd.s32 %s364, %s362
        %s366 = scalar_lea.vmem %s4, %s365
        %s368 = sadd.s32 %s27, %s28
        %p369 = scmp.eq.s32.totalorder %s26, 0
        // Predicated region
        $region41: #{tpu_custom_call.1} parent=39 // pred_check
          %p370 = pneg %p369
        $region42: #{tpu_custom_call.1} parent=39 // pred_check_branch
          %372 = sbr.rel (%p370) target = $region44
        $region43: #{tpu_custom_call.1} parent=39 // pred_region
          %v373 = vld [vmem:[%s344] sm:$0xf]
          %v374 = vpack.c.bf16 %v373, %v373
          %v375 = vld [vmem:[%s349] sm:$0xf]
          %v376 = vld [vmem:[%s349 + $0x4] sm:$0xf]
          %v377 = vld [vmem:[%s349 + $0x8] sm:$0xf]
          %v378 = vld [vmem:[%s349 + $0xc] sm:$0xf]
          %v379 = vld [vmem:[%s349 + $0x10] sm:$0xf]
          %v380 = vld [vmem:[%s349 + $0x14] sm:$0xf]
          %v381 = vld [vmem:[%s349 + $0x18] sm:$0xf]
          %v382 = vld [vmem:[%s349 + $0x1c] sm:$0xf]
          %v383 = vld [vmem:[%s349 + $0x20] sm:$0xf]
          %v384 = vld [vmem:[%s349 + $0x24] sm:$0xf]
          %v385 = vld [vmem:[%s349 + $0x28] sm:$0xf]
          %v386 = vld [vmem:[%s349 + $0x2c] sm:$0xf]
          %v387 = vld [vmem:[%s349 + $0x30] sm:$0xf]
          %v388 = vld [vmem:[%s349 + $0x34] sm:$0xf]
          %v389 = vld [vmem:[%s349 + $0x38] sm:$0xf]
          %v390 = vld [vmem:[%s349 + $0x3c] sm:$0xf]
          %v391 = vld [vmem:[%s352] sm:$0x1]
          %v393 = vlaneseq
          %v394 = vshrl.u32 %v393, 7
          %v395 = vsub.s32 0, %v394
          %v396 = vrot.slane %v391, %v395
          %v414 = vunpack.c.l.b16 %v375
          %v415 = vunpack.c.l.b16 %v376
          %v416 = vunpack.c.l.b16 %v377
          %v417 = vunpack.c.l.b16 %v378
          %v418 = vunpack.c.l.b16 %v379
          %v419 = vunpack.c.l.b16 %v380
          %v420 = vunpack.c.l.b16 %v381
          %v421 = vunpack.c.l.b16 %v382
          %v422 = vunpack.c.l.b16 %v383
          %v423 = vunpack.c.l.b16 %v384
          %v424 = vunpack.c.l.b16 %v385
          %v425 = vunpack.c.l.b16 %v386
          %v426 = vunpack.c.l.b16 %v387
          %v427 = vunpack.c.l.b16 %v388
          %v428 = vunpack.c.l.b16 %v389
          %v429 = vunpack.c.l.b16 %v390
          %v430 = vpack.c.b16 %v415, %v414
          %v431 = vpack.c.b16 %v417, %v416
          %v432 = vpack.c.b16 %v419, %v418
          %v433 = vpack.c.b16 %v421, %v420
          %v434 = vpack.c.b16 %v423, %v422
          %v435 = vpack.c.b16 %v425, %v424
          %v436 = vpack.c.b16 %v427, %v426
          %v437 = vpack.c.b16 %v429, %v428
          %446 = vmatprep.subr.bf16.mxu0 0
          %447 = vmatpush1.bf16.msra.mxu0 %v437
          %448 = vmatprep.subr.bf16.mxu0 0
          %449 = vmatpush1.bf16.msra.mxu0 %v436
          %450 = vmatprep.subr.bf16.mxu0 0
          %451 = vmatpush1.bf16.msra.mxu0 %v435
          %452 = vmatprep.subr.bf16.mxu0 0
          %453 = vmatpush1.bf16.msra.mxu0 %v434
          %454 = vmatprep.subr.bf16.mxu0 0
          %455 = vmatpush1.bf16.msra.mxu0 %v433
          %456 = vmatprep.subr.bf16.mxu0 0
          %457 = vmatpush1.bf16.msra.mxu0 %v432
          %458 = vmatprep.subr.bf16.mxu0 0
          %459 = vmatpush1.bf16.msra.mxu0 %v431
          %460 = vmatprep.subr.bf16.mxu0 0
          %461 = vmatpush1.bf16.msra.mxu0 %v430
          %462 = vmatprep.subr.bf16.mxu0 0
          %463 = vmatpush2.bf16.msra.mxu0 0
          %464 = vmatprep.subr.bf16.mxu0 0
          %465 = vmatpush2.bf16.msra.mxu0 0
          %466 = vmatprep.subr.bf16.mxu0 0
          %467 = vmatpush2.bf16.msra.mxu0 0
          %468 = vmatprep.subr.bf16.mxu0 0
          %469 = vmatpush2.bf16.msra.mxu0 0
          %470 = vmatprep.subr.bf16.mxu0 0
          %471 = vmatpush2.bf16.msra.mxu0 0
          %472 = vmatprep.subr.bf16.mxu0 0
          %473 = vmatpush2.bf16.msra.mxu0 0
          %474 = vmatprep.subr.bf16.mxu0 0
          %475 = vmatpush2.bf16.msra.mxu0 0
          %476 = vmatprep.subr.bf16.mxu0 0
          %477 = vmatpush2.bf16.msra.mxu0 0
          %478 = vmatprep.mubr.bf16.mxu0 0
          %479 = vmatmul.mubr.bf16.gmra.mxu0 %v374
          %v480 = vpop.f32.mrf.mxu0
          %v481 = vadd.f32 %v396, %v480
          %v482 = vpop.f32.mrf.mxu0
          %v483 = vpop.f32.mrf.mxu0
          %v484 = vpop.f32.mrf.mxu0
          %485 = vdwg.mxu0
          %v486 = vmax.f32 %v481, 0.0
          %v487 = vpack.c.bf16 %v486, %v486
          %s488 = smul.addr %s368, 2
          %s489 = scalar_lea.vmem [#allocation2], %s488
          %490 = vst [vmem:[%s489] sm:$0x3] %v487
        $region44: #{tpu_custom_call.1} parent=39 // pred_fallthru
          _
        %s491 = smul.addr %s368, 2
        %s492 = scalar_lea.vmem [#allocation2], %s491
        %v493 = vld [vmem:[%s492] sm:$0x3]
        %v494 = vld [vmem:[%s360] sm:$0xf]
        %v495 = vld [vmem:[%s360 + $0x4] sm:$0xf]
        %v496 = vld [vmem:[%s360 + $0x8] sm:$0xf]
        %v497 = vld [vmem:[%s360 + $0xc] sm:$0xf]
        %v498 = vld [vmem:[%s360 + $0x10] sm:$0xf]
        %v499 = vld [vmem:[%s360 + $0x14] sm:$0xf]
        %v500 = vld [vmem:[%s360 + $0x18] sm:$0xf]
        %v501 = vld [vmem:[%s360 + $0x1c] sm:$0xf]
        %v502 = vld [vmem:[%s360 + $0x20] sm:$0xf]
        %v503 = vld [vmem:[%s360 + $0x24] sm:$0xf]
        %v504 = vld [vmem:[%s360 + $0x28] sm:$0xf]
        %v505 = vld [vmem:[%s360 + $0x2c] sm:$0xf]
        %v506 = vld [vmem:[%s360 + $0x30] sm:$0xf]
        %v507 = vld [vmem:[%s360 + $0x34] sm:$0xf]
        %v508 = vld [vmem:[%s360 + $0x38] sm:$0xf]
        %v509 = vld [vmem:[%s360 + $0x3c] sm:$0xf]
        %v510 = vld [vmem:[%s366] sm:$0x1]
        %v512 = vlaneseq
        %v513 = vshrl.u32 %v512, 7
        %v514 = vsub.s32 0, %v513
        %v515 = vrot.slane %v510, %v514
        %v533 = vunpack.c.l.b16 %v494
        %v534 = vunpack.c.l.b16 %v495
        %v535 = vunpack.c.l.b16 %v496
        %v536 = vunpack.c.l.b16 %v497
        %v537 = vunpack.c.l.b16 %v498
        %v538 = vunpack.c.l.b16 %v499
        %v539 = vunpack.c.l.b16 %v500
        %v540 = vunpack.c.l.b16 %v501
        %v541 = vunpack.c.l.b16 %v502
        %v542 = vunpack.c.l.b16 %v503
        %v543 = vunpack.c.l.b16 %v504
        %v544 = vunpack.c.l.b16 %v505
        %v545 = vunpack.c.l.b16 %v506
        %v546 = vunpack.c.l.b16 %v507
        %v547 = vunpack.c.l.b16 %v508
        %v548 = vunpack.c.l.b16 %v509
        %v549 = vpack.c.b16 %v534, %v533
        %v550 = vpack.c.b16 %v536, %v535
        %v551 = vpack.c.b16 %v538, %v537
        %v552 = vpack.c.b16 %v540, %v539
        %v553 = vpack.c.b16 %v542, %v541
        %v554 = vpack.c.b16 %v544, %v543
        %v555 = vpack.c.b16 %v546, %v545
        %v556 = vpack.c.b16 %v548, %v547
        %565 = vmatprep.subr.bf16.mxu0 0
        %566 = vmatpush1.bf16.msra.mxu0 %v556
        %567 = vmatprep.subr.bf16.mxu0 0
        %568 = vmatpush1.bf16.msra.mxu0 %v555
        %569 = vmatprep.subr.bf16.mxu0 0
        %570 = vmatpush1.bf16.msra.mxu0 %v554
        %571 = vmatprep.subr.bf16.mxu0 0
        %572 = vmatpush1.bf16.msra.mxu0 %v553
        %573 = vmatprep.subr.bf16.mxu0 0
        %574 = vmatpush1.bf16.msra.mxu0 %v552
        %575 = vmatprep.subr.bf16.mxu0 0
        %576 = vmatpush1.bf16.msra.mxu0 %v551
        %577 = vmatprep.subr.bf16.mxu0 0
        %578 = vmatpush1.bf16.msra.mxu0 %v550
        %579 = vmatprep.subr.bf16.mxu0 0
        %580 = vmatpush1.bf16.msra.mxu0 %v549
        %581 = vmatprep.subr.bf16.mxu0 0
        %582 = vmatpush2.bf16.msra.mxu0 0
        %583 = vmatprep.subr.bf16.mxu0 0
        %584 = vmatpush2.bf16.msra.mxu0 0
        %585 = vmatprep.subr.bf16.mxu0 0
        %586 = vmatpush2.bf16.msra.mxu0 0
        %587 = vmatprep.subr.bf16.mxu0 0
        %588 = vmatpush2.bf16.msra.mxu0 0
        %589 = vmatprep.subr.bf16.mxu0 0
        %590 = vmatpush2.bf16.msra.mxu0 0
        %591 = vmatprep.subr.bf16.mxu0 0
        %592 = vmatpush2.bf16.msra.mxu0 0
        %593 = vmatprep.subr.bf16.mxu0 0
        %594 = vmatpush2.bf16.msra.mxu0 0
        %595 = vmatprep.subr.bf16.mxu0 0
        %596 = vmatpush2.bf16.msra.mxu0 0
        %597 = vmatprep.mubr.bf16.mxu0 0
        %598 = vmatmul.mubr.bf16.gmra.mxu0 %v493
        %v599 = vpop.f32.mrf.mxu0
        %v600 = vadd.f32 %v515, %v599
        %v601 = vpop.f32.mrf.mxu0
        %v602 = vpop.f32.mrf.mxu0
        %v603 = vpop.f32.mrf.mxu0
        %604 = vdwg.mxu0
        %v605 = vmax.f32 %v600, 0.0
        %vm606 = vcmask 257024
        %607 = vst.msk [vmem:[%s333] sm:$0xf] %vm606, %v605
        %s608 = sand.u32 %s197, 1
        %s609 = scalar_lea.sflag [#allocation4], %s608
        %s610 = sand.u32 %s197, 1
        %s611 = smul.addr %s610, 4
        %s612 = scalar_lea.vmem [#allocation3], %s611
        // Predicated region
        $region45: #{tpu_custom_call.1} parent=39 // pred_check
          %p613 = pneg %p207
        $region46: #{tpu_custom_call.1} parent=39 // pred_check_branch
          %615 = sbr.rel (%p613) target = $region48
        $region47: #{tpu_custom_call.1} parent=39 // pred_region
          %s617 = ssub.s32 64, 64
          %618 = vsyncadd %s609, %s617
          %s619 = sadd.s32 %s26, %s28
          %s620 = sadd.s32 %s619, %s25
          %s621 = smul.addr %s27, 6
          %s622 = sadd.s32 %s620, %s621
          %s623 = smul.addr %s622, 64
          %s624 = scalar_lea.hbm %s5, %s623
          %s626 = sshll.u32 %s612, 4
          %s627 = int_to_ptr.vmem [resolvable:$true] %s626
          %629 = dma.vmem_to_hbm [thread:$0]  %s627, 64, %s624, %s609
        $region48: #{tpu_custom_call.1} parent=39 // pred_fallthru
          _
      $region40: #{tpu_custom_call.1} parent=5 // pred_fallthru
        _
      %p630 = scmp.le.s32.totalorder 2, %s14
      // Predicated region
      $region49: #{tpu_custom_call.1} parent=5 // pred_check
        %p631 = pneg %p630
      $region50: #{tpu_custom_call.1} parent=5 // pred_check_branch
        %633 = sbr.rel (%p631) target = $region52
      $region51: #{tpu_custom_call.1} parent=5 // pred_region
        %s634 = ssub.s32 %s14, 2
        // Predicated region
        $region53: #{tpu_custom_call.1} parent=51 // pred_check
          %p635 = pneg %p213
        $region54: #{tpu_custom_call.1} parent=51 // pred_check_branch
          %637 = sbr.rel (%p635) target = $region56
        $region55: #{tpu_custom_call.1} parent=51 // pred_region
          %s638 = sand.u32 %s198, 1
          %s639 = scalar_lea.sflag [#allocation4], %s638
          %s640 = sand.u32 %s198, 1
          %s641 = smul.addr %s640, 4
          %s642 = scalar_lea.vmem [#allocation3], %s641
          %643 = dma.done %s639, 64
        $region56: #{tpu_custom_call.1} parent=51 // pred_fallthru
          _
      $region52: #{tpu_custom_call.1} parent=5 // pred_fallthru
        _
    $region6: #{tpu_custom_call.1} parent=1 // loop_footer
      %s18 = sadd.s32 1, %s14
    $region7: #{tpu_custom_call.1} parent=1 // loop_footer_branch
      %13 = sbr.rel target = $region3
    $region8: #{tpu_custom_call.1} parent=1 // loop_exit
      _
    %644 = vsyncpa [#allocation4], 1
    %s645 = scalar_lea.sflag [#allocation4], 1
    %646 = vsyncpa %s645, 1

// kernel: tpu_custom_call.1
$region0: #{tpu_custom_call.1}
  #allocation0 [shape = 'u32[]', space=smem, size = 0x4, offset = 0x4, fixed_abs, tag = 'smem constant byte address 0x4 - core index']
  #allocation1 [shape = 'u32[144,128]{1,0:T(1,128)}', space=vmem, size = 0x12000, scoped, tag = 'internal scratch']
  #allocation2 [shape = 'bf16[2,4,128]{2,1,0:T(4,128)(2,1)}', space=vmem, size = 0x800, scoped, tag = 'scratch operand']
  %s0 = inlined_call_operand.vmem [shape: f32[2,6,4,128], index: 0, kind: input, shape index: {}]
  %s1 = inlined_call_operand.vmem [shape: bf16[6,128,128], index: 1, kind: input, shape index: {}]
  %s2 = inlined_call_operand.vmem [shape: f32[6,1,128], index: 2, kind: input, shape index: {}]
  %s3 = inlined_call_operand.vmem [shape: bf16[6,128,32], index: 3, kind: input, shape index: {}]
  %s4 = inlined_call_operand.vmem [shape: f32[6,1,32], index: 4, kind: input, shape index: {}]
  %s5 = inlined_call_operand.hbm [shape: f32[2,6,4,32], index: 5, kind: output, shape index: {}]
  %s6 = sld [smem:[#allocation0]]
  $region57: #{tpu_custom_call.1} parent=0
    _
  %s8 = ssub.s32 1, %s6
  %s9 = scalar_select 0, %s8, %s6
  $region1: #{tpu_custom_call.1} parent=0
    #allocation3 [shape = 'u8[4096]{0}', space=vmem, size = 0x1000, scoped, tag = 'output window, operand 0']
    #allocation4 [shape = 's32[2]{0}', space=sflag, size = 0x8, scoped, tag = 'scoped memory for tpu_custom_call.1']
    %10 = vsyncpa [#allocation4], 0
    %s11 = scalar_lea.sflag [#allocation4], 1
    %12 = vsyncpa %s11, 0
    loop: start=0, step=1, limit=14
    $region2: #{tpu_custom_call.1} parent=1 // loop_pre_header
      _
    $region3: #{tpu_custom_call.1} parent=1 // loop_header
      %s14 = sphi 0, %s18
      %p15 = scmp.ge.s32.totalorder %s14, 14
      %s21 = sphi 0, %s47
      %s22 = sphi 0, %s43
      %s23 = sphi 0, %s39
      %s24 = sphi 0, %s35
      %s25 = sphi 0, %s21
      %s26 = sphi 0, %s22
      %s27 = sphi 0, %s23
      %s28 = sphi 0, %s24
      %s29 = sphi 0, %s25
      %s30 = sphi 0, %s26
      %s31 = sphi 0, %s27
      %s32 = sphi 0, %s28
      %s54 = sphi 0, %s56
      %s57 = sphi 0, %s54
      %s58 = sphi 0, %s57
      %s74 = sphi 0, %s58
      %s80 = sphi 0, %s82
      %s83 = sphi 0, %s80
      %s84 = sphi 0, %s83
      %s100 = sphi 0, %s84
      %s106 = sphi 0, %s108
      %s109 = sphi 0, %s106
      %s110 = sphi 0, %s109
      %s126 = sphi 0, %s110
      %s134 = sphi 0, %s136
      %s137 = sphi 0, %s134
      %s138 = sphi 0, %s137
      %s154 = sphi 0, %s138
      %s162 = sphi 0, %s164
      %s165 = sphi 0, %s162
      %s166 = sphi 0, %s165
      %s182 = sphi 0, %s166
      %s194 = sphi 0, %s196
      %s197 = sphi 0, %s194
      %s198 = sphi 0, %s197
      %s214 = sphi 0, %s198
    $region4: #{tpu_custom_call.1} parent=1 // loop_header_branch
      %17 = sbr.rel (%p15) target = $region8
    $region5: #{tpu_custom_call.1} parent=1 // loop_body
      %s19 = ssub.s32 %s14, 1
      %s20 = ssub.s32 %s14, 2
      %s33 = sadd.s32 1, %s24
      %p34 = scmp.ge.s32.totalorder %s33, 1
      %s35 = scalar_select %p34, 0, %s33
      %s36 = sadd.s32 1, %s23
      %s37 = scalar_select %p34, %s36, %s23
      %p38 = scmp.ge.s32.totalorder %s37, 2
      %s39 = scalar_select %p38, 0, %s37
      %s40 = sadd.s32 1, %s22
      %s41 = scalar_select %p38, %s40, %s22
      %p42 = scmp.ge.s32.totalorder %s41, 1
      %s43 = scalar_select %p42, 0, %s41
      %s44 = sadd.s32 1, %s21
      %s45 = scalar_select %p42, %s44, %s21
      %p46 = scmp.ge.s32.totalorder %s45, 6
      %s47 = scalar_select %p46, 0, %s45
      %s48 = ssub.s32 %s23, %s39
      %s49 = ssub.s32 %s21, %s47
      %s50 = sor.u32 %s48, %s49
      %s51 = ssub.s32 %s24, %s35
      %s52 = sor.u32 %s50, %s51
      %p53 = scmp.eq.s32.totalorder %s52, 0
      %s55 = sadd.s32 %s54, 1
      %s56 = scalar_select %p53, %s54, %s55
      %p59 = pneg %p53
      %p60 = scmp.eq.s32.totalorder %s14, 11
      %p61 = por %p59, %p60
      %p62 = scmp.ne.s32.totalorder %s54, %s57
      %p63 = scmp.eq.s32.totalorder %s14, 0
      %p64 = por %p62, %p63
      %p65 = scmp.ne.s32.totalorder %s54, %s57
      %p66 = scmp.eq.s32.totalorder %s19, 11
      %p67 = por %p65, %p66
      %p68 = scmp.ne.s32.totalorder %s57, %s58
      %p69 = scmp.eq.s32.totalorder %s19, 0
      %p70 = por %p68, %p69
      %p71 = scmp.ne.s32.totalorder %s57, %s58
      %p72 = scmp.eq.s32.totalorder %s20, 11
      %p73 = por %p71, %p72
      %p75 = scmp.ne.s32.totalorder %s58, %s74
      %p76 = scmp.eq.s32.totalorder %s20, 0
      %p77 = por %p75, %p76
      %s78 = ssub.s32 %s21, %s47
      %p79 = scmp.eq.s32.totalorder %s78, 0
      %s81 = sadd.s32 %s80, 1
      %s82 = scalar_select %p79, %s80, %s81
      %p85 = pneg %p79
      %p86 = scmp.eq.s32.totalorder %s14, 11
      %p87 = por %p85, %p86
      %p88 = scmp.ne.s32.totalorder %s80, %s83
      %p89 = scmp.eq.s32.totalorder %s14, 0
      %p90 = por %p88, %p89
      %p91 = scmp.ne.s32.totalorder %s80, %s83
      %p92 = scmp.eq.s32.totalorder %s19, 11
      %p93 = por %p91, %p92
      %p94 = scmp.ne.s32.totalorder %s83, %s84
      %p95 = scmp.eq.s32.totalorder %s19, 0
      %p96 = por %p94, %p95
      %p97 = scmp.ne.s32.totalorder %s83, %s84
      %p98 = scmp.eq.s32.totalorder %s20, 11
      %p99 = por %p97, %p98
      %p101 = scmp.ne.s32.totalorder %s84, %s100
      %p102 = scmp.eq.s32.totalorder %s20, 0
      %p103 = por %p101, %p102
      %s104 = ssub.s32 %s21, %s47
      %p105 = scmp.eq.s32.totalorder %s104, 0
      %s107 = sadd.s32 %s106, 1
      %s108 = scalar_select %p105, %s106, %s107
      %p111 = pneg %p105
      %p112 = scmp.eq.s32.totalorder %s14, 11
      %p113 = por %p111, %p112
      %p114 = scmp.ne.s32.totalorder %s106, %s109
      %p115 = scmp.eq.s32.totalorder %s14, 0
      %p116 = por %p114, %p115
      %p117 = scmp.ne.s32.totalorder %s106, %s109
      %p118 = scmp.eq.s32.totalorder %s19, 11
      %p119 = por %p117, %p118
      %p120 = scmp.ne.s32.totalorder %s109, %s110
      %p121 = scmp.eq.s32.totalorder %s19, 0
      %p122 = por %p120, %p121
      %p123 = scmp.ne.s32.totalorder %s109, %s110
      %p124 = scmp.eq.s32.totalorder %s20, 11
      %p125 = por %p123, %p124
      %p127 = scmp.ne.s32.totalorder %s110, %s126
      %p128 = scmp.eq.s32.totalorder %s20, 0
      %p129 = por %p127, %p128
      %s130 = ssub.s32 %s21, %s47
      %s131 = ssub.s32 %s22, %s43
      %s132 = sor.u32 %s130, %s131
      %p133 = scmp.eq.s32.totalorder %s132, 0
      %s135 = sadd.s32 %s134, 1
      %s136 = scalar_select %p133, %s134, %s135
      %p139 = pneg %p133
      %p140 = scmp.eq.s32.totalorder %s14, 11
      %p141 = por %p139, %p140
      %p142 = scmp.ne.s32.totalorder %s134, %s137
      %p143 = scmp.eq.s32.totalorder %s14, 0
      %p144 = por %p142, %p143
      %p145 = scmp.ne.s32.totalorder %s134, %s137
      %p146 = scmp.eq.s32.totalorder %s19, 11
      %p147 = por %p145, %p146
      %p148 = scmp.ne.s32.totalorder %s137, %s138
      %p149 = scmp.eq.s32.totalorder %s19, 0
      %p150 = por %p148, %p149
      %p151 = scmp.ne.s32.totalorder %s137, %s138
      %p152 = scmp.eq.s32.totalorder %s20, 11
      %p153 = por %p151, %p152
      %p155 = scmp.ne.s32.totalorder %s138, %s154
      %p156 = scmp.eq.s32.totalorder %s20, 0
      %p157 = por %p155, %p156
      %s158 = ssub.s32 %s21, %s47
      %s159 = ssub.s32 %s22, %s43
      %s160 = sor.u32 %s158, %s159
      %p161 = scmp.eq.s32.totalorder %s160, 0
      %s163 = sadd.s32 %s162, 1
      %s164 = scalar_select %p161, %s162, %s163
      %p167 = pneg %p161
      %p168 = scmp.eq.s32.totalorder %s14, 11
      %p169 = por %p167, %p168
      %p170 = scmp.ne.s32.totalorder %s162, %s165
      %p171 = scmp.eq.s32.totalorder %s14, 0
      %p172 = por %p170, %p171
      %p173 = scmp.ne.s32.totalorder %s162, %s165
      %p174 = scmp.eq.s32.totalorder %s19, 11
      %p175 = por %p173, %p174
      %p176 = scmp.ne.s32.totalorder %s165, %s166
      %p177 = scmp.eq.s32.totalorder %s19, 0
      %p178 = por %p176, %p177
      %p179 = scmp.ne.s32.totalorder %s165, %s166
      %p180 = scmp.eq.s32.totalorder %s20, 11
      %p181 = por %p179, %p180
      %p183 = scmp.ne.s32.totalorder %s166, %s182
      %p184 = scmp.eq.s32.totalorder %s20, 0
      %p185 = por %p183, %p184
      %s186 = ssub.s32 %s23, %s39
      %s187 = ssub.s32 %s21, %s47
      %s188 = sor.u32 %s186, %s187
      %s189 = ssub.s32 %s24, %s35
      %s190 = sor.u32 %s188, %s189
      %s191 = ssub.s32 %s22, %s43
      %s192 = sor.u32 %s190, %s191
      %p193 = scmp.eq.s32.totalorder %s192, 0
      %s195 = sadd.s32 %s194, 1
      %s196 = scalar_select %p193, %s194, %s195
      %p199 = pneg %p193
      %p200 = scmp.eq.s32.totalorder %s14, 11
      %p201 = por %p199, %p200
      %p202 = scmp.ne.s32.totalorder %s194, %s197
      %p203 = scmp.eq.s32.totalorder %s14, 0
      %p204 = por %p202, %p203
      %p205 = scmp.ne.s32.totalorder %s194, %s197
      %p206 = scmp.eq.s32.totalorder %s19, 11
      %p207 = por %p205, %p206
      %p208 = scmp.ne.s32.totalorder %s197, %s198
      %p209 = scmp.eq.s32.totalorder %s19, 0
      %p210 = por %p208, %p209
      %p211 = scmp.ne.s32.totalorder %s197, %s198
      %p212 = scmp.eq.s32.totalorder %s20, 11
      %p213 = por %p211, %p212
      %p215 = scmp.ne.s32.totalorder %s198, %s214
      %p216 = scmp.eq.s32.totalorder %s20, 0
      %p217 = por %p215, %p216
      %p218 = scmp.le.s32.totalorder 1, %s14
      %p219 = scmp.lt.s32.totalorder %s14, 13
      %p220 = pnand %p218, %p219
      %p221 = pneg %p220
      // Predicated region
      $region9: #{tpu_custom_call.1} parent=5 // pred_check
        _
      $region10: #{tpu_custom_call.1} parent=5 // pred_check_branch
        %223 = sbr.rel (%p220) target = $region12
      $region11: #{tpu_custom_call.1} parent=5 // pred_region
        %s224 = ssub.s32 %s14, 1
      $region12: #{tpu_custom_call.1} parent=5 // pred_fallthru
        _
      %p225 = scmp.lt.s32.totalorder %s14, 12
      // Predicated region
      $region13: #{tpu_custom_call.1} parent=5 // pred_check
        %p226 = pneg %p225
      $region14: #{tpu_custom_call.1} parent=5 // pred_check_branch
        %228 = sbr.rel (%p226) target = $region16
      $region15: #{tpu_custom_call.1} parent=5 // pred_region
        // Predicated region
        $region17: #{tpu_custom_call.1} parent=15 // pred_check
          %p229 = pneg %p64
        $region18: #{tpu_custom_call.1} parent=15 // pred_check_branch
          %231 = sbr.rel (%p229) target = $region20
        $region19: #{tpu_custom_call.1} parent=15 // pred_region
          %p232 = scmp.lt.s32.totalorder %s23, 1
          %s233 = scalar_select %p232, %s23, 1
          %p234 = scmp.lt.s32.totalorder %s21, 5
          %s235 = scalar_select %p234, %s21, 5
          %p236 = scmp.lt.s32.totalorder %s24, 0
          %s237 = scalar_select %p236, %s24, 0
          %s238 = sadd.s32 %s237, %s235
          %s239 = smul.addr %s233, 6
          %s240 = sadd.s32 %s238, %s239
          %s241 = smul.addr %s240, 4
          %s242 = scalar_lea.vmem %s0, %s241
        $region20: #{tpu_custom_call.1} parent=15 // pred_fallthru
          _
        // Predicated region
        $region21: #{tpu_custom_call.1} parent=15 // pred_check
          %p243 = pneg %p90
        $region22: #{tpu_custom_call.1} parent=15 // pred_check_branch
          %245 = sbr.rel (%p243) target = $region24
        $region23: #{tpu_custom_call.1} parent=15 // pred_region
          %p246 = scmp.lt.s32.totalorder %s21, 5
          %s247 = scalar_select %p246, %s21, 5
          %s248 = smul.addr %s247, 16
          %s249 = smul.addr %s248, 4
          %s250 = scalar_lea.vmem %s1, %s249
        $region24: #{tpu_custom_call.1} parent=15 // pred_fallthru
          _
        // Predicated region
        $region25: #{tpu_custom_call.1} parent=15 // pred_check
          %p251 = pneg %p116
        $region26: #{tpu_custom_call.1} parent=15 // pred_check_branch
          %253 = sbr.rel (%p251) target = $region28
        $region27: #{tpu_custom_call.1} parent=15 // pred_region
          %p254 = scmp.lt.s32.totalorder %s21, 5
          %s255 = scalar_select %p254, %s21, 5
          %s256 = scalar_lea.vmem %s2, %s255
        $region28: #{tpu_custom_call.1} parent=15 // pred_fallthru
          _
        // Predicated region
        $region29: #{tpu_custom_call.1} parent=15 // pred_check
          %p257 = pneg %p144
        $region30: #{tpu_custom_call.1} parent=15 // pred_check_branch
          %259 = sbr.rel (%p257) target = $region32
        $region31: #{tpu_custom_call.1} parent=15 // pred_region
          %p260 = scmp.lt.s32.totalorder %s21, 5
          %s261 = scalar_select %p260, %s21, 5
          %p262 = scmp.lt.s32.totalorder %s22, 0
          %s263 = scalar_select %p262, %s22, 0
          %s264 = smul.addr %s261, 16
          %s265 = sadd.s32 %s263, %s264
          %s266 = smul.addr %s265, 4
          %s267 = scalar_lea.vmem %s3, %s266
        $region32: #{tpu_custom_call.1} parent=15 // pred_fallthru
          _
        // Predicated region
        $region33: #{tpu_custom_call.1} parent=15 // pred_check
          %p268 = pneg %p172
        $region34: #{tpu_custom_call.1} parent=15 // pred_check_branch
          %270 = sbr.rel (%p268) target = $region36
        $region35: #{tpu_custom_call.1} parent=15 // pred_region
          %p271 = scmp.lt.s32.totalorder %s21, 5
          %s272 = scalar_select %p271, %s21, 5
          %p273 = scmp.lt.s32.totalorder %s22, 0
          %s274 = scalar_select %p273, %s22, 0
          %s275 = sadd.s32 %s274, %s272
          %s276 = scalar_lea.vmem %s4, %s275
        $region36: #{tpu_custom_call.1} parent=15 // pred_fallthru
          _
      $region16: #{tpu_custom_call.1} parent=5 // pred_fallthru
        _
      %p277 = scmp.le.s32.totalorder 1, %s14
      %p278 = scmp.lt.s32.totalorder %s14, 13
      %p279 = pnand %p277, %p278
      %p280 = pneg %p279
      // Predicated region
      $region37: #{tpu_custom_call.1} parent=5 // pred_check
        _
      $region38: #{tpu_custom_call.1} parent=5 // pred_check_branch
        %282 = sbr.rel (%p279) target = $region40
      $region39: #{tpu_custom_call.1} parent=5 // pred_region
        %s283 = ssub.s32 %s14, 1
        %p284 = scmp.lt.s32.totalorder %s27, 1
        %s285 = scalar_select %p284, %s27, 1
        %p286 = scmp.lt.s32.totalorder %s25, 5
        %s287 = scalar_select %p286, %s25, 5
        %p288 = scmp.lt.s32.totalorder %s28, 0
        %s289 = scalar_select %p288, %s28, 0
        %s290 = sadd.s32 %s289, %s287
        %s291 = smul.addr %s285, 6
        %s292 = sadd.s32 %s290, %s291
        %s293 = smul.addr %s292, 4
        %s294 = scalar_lea.vmem %s0, %s293
        %p295 = pneg %p70
        %p296 = pneg %p67
        %p297 = scmp.lt.s32.totalorder %s25, 5
        %s298 = scalar_select %p297, %s25, 5
        %s299 = smul.addr %s298, 16
        %s300 = smul.addr %s299, 4
        %s301 = scalar_lea.vmem %s1, %s300
        %p302 = pneg %p96
        %p303 = pneg %p93
        %p304 = scmp.lt.s32.totalorder %s25, 5
        %s305 = scalar_select %p304, %s25, 5
        %s306 = scalar_lea.vmem %s2, %s305
        %p307 = pneg %p122
        %p308 = pneg %p119
        %p309 = scmp.lt.s32.totalorder %s25, 5
        %s310 = scalar_select %p309, %s25, 5
        %p311 = scmp.lt.s32.totalorder %s26, 0
        %s312 = scalar_select %p311, %s26, 0
        %s313 = smul.addr %s310, 16
        %s314 = sadd.s32 %s312, %s313
        %s315 = smul.addr %s314, 4
        %s316 = scalar_lea.vmem %s3, %s315
        %p317 = pneg %p150
        %p318 = pneg %p147
        %p319 = scmp.lt.s32.totalorder %s25, 5
        %s320 = scalar_select %p319, %s25, 5
        %p321 = scmp.lt.s32.totalorder %s26, 0
        %s322 = scalar_select %p321, %s26, 0
        %s323 = sadd.s32 %s322, %s320
        %s324 = scalar_lea.vmem %s4, %s323
        %p325 = pneg %p178
        %p326 = pneg %p175
        %p327 = pneg %p210
        %p328 = pneg %p207
        %s329 = sand.u32 %s197, 1
        %s330 = scalar_lea.sflag [#allocation4], %s329
        %s331 = sand.u32 %s197, 1
        %s332 = smul.addr %s331, 4
        %s333 = scalar_lea.vmem [#allocation3], %s332
        %p334 = scmp.lt.s32.totalorder %s27, 1
        %s335 = scalar_select %p334, %s27, 1
        %p336 = scmp.lt.s32.totalorder %s25, 5
        %s337 = scalar_select %p336, %s25, 5
        %p338 = scmp.lt.s32.totalorder %s28, 0
        %s339 = scalar_select %p338, %s28, 0
        %s340 = sadd.s32 %s339, %s337
        %s341 = smul.addr %s335, 6
        %s342 = sadd.s32 %s340, %s341
        %s343 = smul.addr %s342, 4
        %s344 = scalar_lea.vmem %s0, %s343
        %p345 = scmp.lt.s32.totalorder %s25, 5
        %s346 = scalar_select %p345, %s25, 5
        %s347 = smul.addr %s346, 16
        %s348 = smul.addr %s347, 4
        %s349 = scalar_lea.vmem %s1, %s348
        %p350 = scmp.lt.s32.totalorder %s25, 5
        %s351 = scalar_select %p350, %s25, 5
        %s352 = scalar_lea.vmem %s2, %s351
        %p353 = scmp.lt.s32.totalorder %s25, 5
        %s354 = scalar_select %p353, %s25, 5
        %p355 = scmp.lt.s32.totalorder %s26, 0
        %s356 = scalar_select %p355, %s26, 0
        %s357 = smul.addr %s354, 16
        %s358 = sadd.s32 %s356, %s357
        %s359 = smul.addr %s358, 4
        %s360 = scalar_lea.vmem %s3, %s359
        %p361 = scmp.lt.s32.totalorder %s25, 5
        %s362 = scalar_select %p361, %s25, 5
        %p363 = scmp.lt.s32.totalorder %s26, 0
        %s364 = scalar_select %p363, %s26, 0
        %s365 = sadd.s32 %s364, %s362
        %s366 = scalar_lea.vmem %s4, %s365
        %s368 = sadd.s32 %s27, %s28
        %p369 = scmp.eq.s32.totalorder %s26, 0
        // Predicated region
        $region41: #{tpu_custom_call.1} parent=39 // pred_check
          %p370 = pneg %p369
        $region42: #{tpu_custom_call.1} parent=39 // pred_check_branch
          %372 = sbr.rel (%p370) target = $region44
        $region43: #{tpu_custom_call.1} parent=39 // pred_region
          %v373 = vld [vmem:[%s344] sm:$0xf]
          %v374 = vpack.c.bf16 %v373, %v373
          %v375 = vld [vmem:[%s349] sm:$0xf]
          %v376 = vld [vmem:[%s349 + $0x4] sm:$0xf]
          %v377 = vld [vmem:[%s349 + $0x8] sm:$0xf]
          %v378 = vld [vmem:[%s349 + $0xc] sm:$0xf]
          %v379 = vld [vmem:[%s349 + $0x10] sm:$0xf]
          %v380 = vld [vmem:[%s349 + $0x14] sm:$0xf]
          %v381 = vld [vmem:[%s349 + $0x18] sm:$0xf]
          %v382 = vld [vmem:[%s349 + $0x1c] sm:$0xf]
          %v383 = vld [vmem:[%s349 + $0x20] sm:$0xf]
          %v384 = vld [vmem:[%s349 + $0x24] sm:$0xf]
          %v385 = vld [vmem:[%s349 + $0x28] sm:$0xf]
          %v386 = vld [vmem:[%s349 + $0x2c] sm:$0xf]
          %v387 = vld [vmem:[%s349 + $0x30] sm:$0xf]
          %v388 = vld [vmem:[%s349 + $0x34] sm:$0xf]
          %v389 = vld [vmem:[%s349 + $0x38] sm:$0xf]
          %v390 = vld [vmem:[%s349 + $0x3c] sm:$0xf]
          %v391 = vld [vmem:[%s352] sm:$0x1]
          %v393 = vlaneseq
          %v394 = vshrl.u32 %v393, 7
          %v395 = vsub.s32 0, %v394
          %v396 = vrot.slane %v391, %v395
          %v414 = vunpack.c.l.b16 %v375
          %v415 = vunpack.c.l.b16 %v376
          %v416 = vunpack.c.l.b16 %v377
          %v417 = vunpack.c.l.b16 %v378
          %v418 = vunpack.c.l.b16 %v379
          %v419 = vunpack.c.l.b16 %v380
          %v420 = vunpack.c.l.b16 %v381
          %v421 = vunpack.c.l.b16 %v382
          %v422 = vunpack.c.l.b16 %v383
          %v423 = vunpack.c.l.b16 %v384
          %v424 = vunpack.c.l.b16 %v385
          %v425 = vunpack.c.l.b16 %v386
          %v426 = vunpack.c.l.b16 %v387
          %v427 = vunpack.c.l.b16 %v388
          %v428 = vunpack.c.l.b16 %v389
          %v429 = vunpack.c.l.b16 %v390
          %v430 = vpack.c.b16 %v415, %v414
          %v431 = vpack.c.b16 %v417, %v416
          %v432 = vpack.c.b16 %v419, %v418
          %v433 = vpack.c.b16 %v421, %v420
          %v434 = vpack.c.b16 %v423, %v422
          %v435 = vpack.c.b16 %v425, %v424
          %v436 = vpack.c.b16 %v427, %v426
          %v437 = vpack.c.b16 %v429, %v428
          %446 = vmatprep.subr.bf16.mxu0 0
          %447 = vmatpush1.bf16.msra.mxu0 %v437
          %448 = vmatprep.subr.bf16.mxu0 0
          %449 = vmatpush1.bf16.msra.mxu0 %v436
          %450 = vmatprep.subr.bf16.mxu0 0
          %451 = vmatpush1.bf16.msra.mxu0 %v435
          %452 = vmatprep.subr.bf16.mxu0 0
          %453 = vmatpush1.bf16.msra.mxu0 %v434
          %454 = vmatprep.subr.bf16.mxu0 0
          %455 = vmatpush1.bf16.msra.mxu0 %v433
          %456 = vmatprep.subr.bf16.mxu0 0
          %457 = vmatpush1.bf16.msra.mxu0 %v432
          %458 = vmatprep.subr.bf16.mxu0 0
          %459 = vmatpush1.bf16.msra.mxu0 %v431
          %460 = vmatprep.subr.bf16.mxu0 0
          %461 = vmatpush1.bf16.msra.mxu0 %v430
          %462 = vmatprep.subr.bf16.mxu0 0
          %463 = vmatpush2.bf16.msra.mxu0 0
          %464 = vmatprep.subr.bf16.mxu0 0
          %465 = vmatpush2.bf16.msra.mxu0 0
          %466 = vmatprep.subr.bf16.mxu0 0
          %467 = vmatpush2.bf16.msra.mxu0 0
          %468 = vmatprep.subr.bf16.mxu0 0
          %469 = vmatpush2.bf16.msra.mxu0 0
          %470 = vmatprep.subr.bf16.mxu0 0
          %471 = vmatpush2.bf16.msra.mxu0 0
          %472 = vmatprep.subr.bf16.mxu0 0
          %473 = vmatpush2.bf16.msra.mxu0 0
          %474 = vmatprep.subr.bf16.mxu0 0
          %475 = vmatpush2.bf16.msra.mxu0 0
          %476 = vmatprep.subr.bf16.mxu0 0
          %477 = vmatpush2.bf16.msra.mxu0 0
          %478 = vmatprep.mubr.bf16.mxu0 0
          %479 = vmatmul.mubr.bf16.gmra.mxu0 %v374
          %v480 = vpop.f32.mrf.mxu0
          %v481 = vadd.f32 %v396, %v480
          %v482 = vpop.f32.mrf.mxu0
          %v483 = vpop.f32.mrf.mxu0
          %v484 = vpop.f32.mrf.mxu0
          %485 = vdwg.mxu0
          %v486 = vmax.f32 %v481, 0.0
          %v487 = vpack.c.bf16 %v486, %v486
          %s488 = smul.addr %s368, 2
          %s489 = scalar_lea.vmem [#allocation2], %s488
          %490 = vst [vmem:[%s489] sm:$0x3] %v487
        $region44: #{tpu_custom_call.1} parent=39 // pred_fallthru
          _
        %s491 = smul.addr %s368, 2
        %s492 = scalar_lea.vmem [#allocation2], %s491
        %v493 = vld [vmem:[%s492] sm:$0x3]
        %v494 = vld [vmem:[%s360] sm:$0xf]
        %v495 = vld [vmem:[%s360 + $0x4] sm:$0xf]
        %v496 = vld [vmem:[%s360 + $0x8] sm:$0xf]
        %v497 = vld [vmem:[%s360 + $0xc] sm:$0xf]
        %v498 = vld [vmem:[%s360 + $0x10] sm:$0xf]
        %v499 = vld [vmem:[%s360 + $0x14] sm:$0xf]
        %v500 = vld [vmem:[%s360 + $0x18] sm:$0xf]
        %v501 = vld [vmem:[%s360 + $0x1c] sm:$0xf]
        %v502 = vld [vmem:[%s360 + $0x20] sm:$0xf]
        %v503 = vld [vmem:[%s360 + $0x24] sm:$0xf]
        %v504 = vld [vmem:[%s360 + $0x28] sm:$0xf]
        %v505 = vld [vmem:[%s360 + $0x2c] sm:$0xf]
        %v506 = vld [vmem:[%s360 + $0x30] sm:$0xf]
        %v507 = vld [vmem:[%s360 + $0x34] sm:$0xf]
        %v508 = vld [vmem:[%s360 + $0x38] sm:$0xf]
        %v509 = vld [vmem:[%s360 + $0x3c] sm:$0xf]
        %v510 = vld [vmem:[%s366] sm:$0x1]
        %v512 = vlaneseq
        %v513 = vshrl.u32 %v512, 7
        %v514 = vsub.s32 0, %v513
        %v515 = vrot.slane %v510, %v514
        %v533 = vunpack.c.l.b16 %v494
        %v534 = vunpack.c.l.b16 %v495
        %v535 = vunpack.c.l.b16 %v496
        %v536 = vunpack.c.l.b16 %v497
        %v537 = vunpack.c.l.b16 %v498
        %v538 = vunpack.c.l.b16 %v499
        %v539 = vunpack.c.l.b16 %v500
        %v540 = vunpack.c.l.b16 %v501
        %v541 = vunpack.c.l.b16 %v502
        %v542 = vunpack.c.l.b16 %v503
        %v543 = vunpack.c.l.b16 %v504
        %v544 = vunpack.c.l.b16 %v505
        %v545 = vunpack.c.l.b16 %v506
        %v546 = vunpack.c.l.b16 %v507
        %v547 = vunpack.c.l.b16 %v508
        %v548 = vunpack.c.l.b16 %v509
        %v549 = vpack.c.b16 %v534, %v533
        %v550 = vpack.c.b16 %v536, %v535
        %v551 = vpack.c.b16 %v538, %v537
        %v552 = vpack.c.b16 %v540, %v539
        %v553 = vpack.c.b16 %v542, %v541
        %v554 = vpack.c.b16 %v544, %v543
        %v555 = vpack.c.b16 %v546, %v545
        %v556 = vpack.c.b16 %v548, %v547
        %565 = vmatprep.subr.bf16.mxu0 0
        %566 = vmatpush1.bf16.msra.mxu0 %v556
        %567 = vmatprep.subr.bf16.mxu0 0
        %568 = vmatpush1.bf16.msra.mxu0 %v555
        %569 = vmatprep.subr.bf16.mxu0 0
        %570 = vmatpush1.bf16.msra.mxu0 %v554
        %571 = vmatprep.subr.bf16.mxu0 0
        %572 = vmatpush1.bf16.msra.mxu0 %v553
        %573 = vmatprep.subr.bf16.mxu0 0
        %574 = vmatpush1.bf16.msra.mxu0 %v552
        %575 = vmatprep.subr.bf16.mxu0 0
        %576 = vmatpush1.bf16.msra.mxu0 %v551
        %577 = vmatprep.subr.bf16.mxu0 0
        %578 = vmatpush1.bf16.msra.mxu0 %v550
        %579 = vmatprep.subr.bf16.mxu0 0
        %580 = vmatpush1.bf16.msra.mxu0 %v549
        %581 = vmatprep.subr.bf16.mxu0 0
        %582 = vmatpush2.bf16.msra.mxu0 0
        %583 = vmatprep.subr.bf16.mxu0 0
        %584 = vmatpush2.bf16.msra.mxu0 0
        %585 = vmatprep.subr.bf16.mxu0 0
        %586 = vmatpush2.bf16.msra.mxu0 0
        %587 = vmatprep.subr.bf16.mxu0 0
        %588 = vmatpush2.bf16.msra.mxu0 0
        %589 = vmatprep.subr.bf16.mxu0 0
        %590 = vmatpush2.bf16.msra.mxu0 0
        %591 = vmatprep.subr.bf16.mxu0 0
        %592 = vmatpush2.bf16.msra.mxu0 0
        %593 = vmatprep.subr.bf16.mxu0 0
        %594 = vmatpush2.bf16.msra.mxu0 0
        %595 = vmatprep.subr.bf16.mxu0 0
        %596 = vmatpush2.bf16.msra.mxu0 0
        %597 = vmatprep.mubr.bf16.mxu0 0
        %598 = vmatmul.mubr.bf16.gmra.mxu0 %v493
        %v599 = vpop.f32.mrf.mxu0
        %v600 = vadd.f32 %v515, %v599
        %v601 = vpop.f32.mrf.mxu0
        %v602 = vpop.f32.mrf.mxu0
        %v603 = vpop.f32.mrf.mxu0
        %604 = vdwg.mxu0
        %v605 = vmax.f32 %v600, 0.0
        %vm606 = vcmask 257024
        %607 = vst.msk [vmem:[%s333] sm:$0xf] %vm606, %v605
        %s608 = sand.u32 %s197, 1
        %s609 = scalar_lea.sflag [#allocation4], %s608
        %s610 = sand.u32 %s197, 1
        %s611 = smul.addr %s610, 4
        %s612 = scalar_lea.vmem [#allocation3], %s611
        // Predicated region
        $region45: #{tpu_custom_call.1} parent=39 // pred_check
          %p613 = pneg %p207
        $region46: #{tpu_custom_call.1} parent=39 // pred_check_branch
          %615 = sbr.rel (%p613) target = $region48
        $region47: #{tpu_custom_call.1} parent=39 // pred_region
          %s617 = ssub.s32 64, 64
          %618 = vsyncadd %s609, %s617
          %s619 = sadd.s32 %s26, %s28
          %s620 = sadd.s32 %s619, %s25
          %s621 = smul.addr %s27, 6
          %s622 = sadd.s32 %s620, %s621
          %s623 = smul.addr %s622, 64
          %s624 = scalar_lea.hbm %s5, %s623
          %s626 = sshll.u32 %s612, 4
          %s627 = int_to_ptr.vmem [resolvable:$true] %s626
          %629 = dma.vmem_to_hbm [thread:$0]  %s627, 64, %s624, %s609
        $region48: #{tpu_custom_call.1} parent=39 // pred_fallthru
          _
      $region40: #{tpu_custom_call.1} parent=5 // pred_fallthru
        _
      %p630 = scmp.le.s32.totalorder 2, %s14
      // Predicated region
      $region49: #{tpu_custom_call.1} parent=5 // pred_check
        %p631 = pneg %p630
      $region50: #{tpu_custom_call.1} parent=5 // pred_check_branch
        %633 = sbr.rel (%p631) target = $region52
      $region51: #{tpu_custom_call.1} parent=5 // pred_region
        %s634 = ssub.s32 %s14, 2
        // Predicated region
        $region53: #{tpu_custom_call.1} parent=51 // pred_check
          %p635 = pneg %p213
        $region54: #{tpu_custom_call.1} parent=51 // pred_check_branch
          %637 = sbr.rel (%p635) target = $region56
        $region55: #{tpu_custom_call.1} parent=51 // pred_region
          %s638 = sand.u32 %s198, 1
          %s639 = scalar_lea.sflag [#allocation4], %s638
          %s640 = sand.u32 %s198, 1
          %s641 = smul.addr %s640, 4
          %s642 = scalar_lea.vmem [#allocation3], %s641
          %643 = dma.done %s639, 64
        $region56: #{tpu_custom_call.1} parent=51 // pred_fallthru
          _
      $region52: #{tpu_custom_call.1} parent=5 // pred_fallthru
        _
    $region6: #{tpu_custom_call.1} parent=1 // loop_footer
      %s18 = sadd.s32 1, %s14
    $region7: #{tpu_custom_call.1} parent=1 // loop_footer_branch
      %13 = sbr.rel target = $region3
    $region8: #{tpu_custom_call.1} parent=1 // loop_exit
      _
    %644 = vsyncpa [#allocation4], 1
    %s645 = scalar_lea.sflag [#allocation4], 1
    %646 = vsyncpa %s645, 1

</llo_original>
